<compile_context>
chip_gen: v5e
topology: v5e:2x2
jax: 0.10.0
libtpu: 0.0.40
codegen_flags: <defaults>
</compile_context>

<pallas_src>
import numpy as np
import jax
import jax.numpy as jnp
from jax.experimental import pallas as pl
from jax.experimental.pallas import tpu as pltpu

EPS = 1e-5
NUM_CLASSES = 10
PAD_OUT = 128   # lane-dense padded logits width (sliced back to NUM_CLASSES in the wrapper)


# ------------------------- fused Pallas kernel -------------------------

def _lenet_fused_kernel(xs1_ref, w1c_ref, wb2_ref, bn1_ref, bn2_ref,
                        sel1_ref, bc1_ref, pw1_ref, ah1_ref,
                        sel2_ref, bc2_ref, pw2_ref, ah2_ref,
                        w1r_ref, fb1_ref, w2t_ref, fb2_ref, w3t_ref, fb3_ref,
                        out_ref):
    f32 = jnp.float32
    B = out_ref.shape[0]

    def dot(a, b):
        return jnp.dot(a, b, preferred_element_type=f32)

    def bn_scale_shift(z, gb_ref, sel_ref, bc_ref, inv_n):
        # Train-mode BatchNorm statistics over all (batch, height) rows of the flat
        # [width*C] lane layout; returns lane-broadcast (scale, shift) for the *pooled*
        # lane layout.  One dot for (mean, E[x^2]) and one dot for (scale, shift).
        colsum = jnp.sum(z, axis=0, keepdims=True)
        sqsum = jnp.sum(z * z, axis=0, keepdims=True)
        stats = dot(jnp.concatenate([colsum, sqsum], axis=0), sel_ref[...]) * inv_n  # (2, C)
        mu = stats[0:1, :]
        # Single-pass variance (biased, as in torch train mode); fine at these scales.
        var = stats[1:2, :] - mu * mu
        scale = gb_ref[0:1, :] * jax.lax.rsqrt(var + EPS)
        shift = gb_ref[1:2, :] - scale * mu
        ss = dot(jnp.concatenate([scale, shift], axis=0), bc_ref[...])               # (2, Wp*C)
        return ss[0:1, :], ss[1:2, :]

    # ---- conv1: ONE matmul on the lane-concatenated, 5-shifted input built in the
    # wrapper.  Rows are height-major / batch-minor (row = i*B + b); lanes = ki*32 + col.
    # (Conv biases omitted: per-channel constants cancel exactly under train-mode BN.)
    z1 = dot(xs1_ref[...], w1c_ref[...])                          # (28B, 168), lane = j*6+co
    sc1, sh1 = bn_scale_shift(z1, bn1_ref, sel1_ref, bc1_ref, 1.0 / (B * 28 * 28))
    p1 = dot(ah1_ref[...], dot(z1, pw1_ref[...]))                 # (14B, 84) = avgpool(conv1)
    h1 = jnp.maximum(p1 * sc1 + sh1, 0.0)                         # relu(pool(bn(conv1)))

    # ---- conv2: 5 banded matmuls; the height-major row order makes every per-ki LHS a
    # single contiguous row window of h1 (no per-image gathers / concatenates).
    z2 = dot(h1[0:10 * B, :], wb2_ref[0])
    for ki in range(1, 5):
        z2 = z2 + dot(h1[ki * B:(ki + 10) * B, :], wb2_ref[ki])   # (10B, 160), lane = j*16+co
    sc2, sh2 = bn_scale_shift(z2, bn2_ref, sel2_ref, bc2_ref, 1.0 / (B * 10 * 10))
    p2 = dot(ah2_ref[...], dot(z2, pw2_ref[...]))                 # (5B, 80), rows = ih*B + b
    h2 = jnp.maximum(p2 * sc2 + sh2, 0.0)                         # relu(pool(bn(conv2)))

    # ---- MLP: fc1 weight rows pre-permuted so each height index ih is a contiguous
    # (B, 80) row block of h2 -> 5 dots, no activation transpose / gather needed.
    acc = dot(h2[0:B, :], w1r_ref[0])
    for ih in range(1, 5):
        acc = acc + dot(h2[ih * B:(ih + 1) * B, :], w1r_ref[ih])
    h = acc + fb1_ref[...]
    h = dot(h, w2t_ref[...]) + fb2_ref[...]                       # fc2 (no activation, as in module)
    out_ref[...] = dot(h, w3t_ref[...]) + fb3_ref[...]            # fc3, lane-padded to 128


# ------------------------- one-time parameter / constant preprocessing (host) -------------------------

def prepare_params(p, batch_size):
    f32 = np.float32
    B = batch_size

    def banded(w, w_in, w_out):
        # (Co, Ci, K, K) -> (K, w_in*Ci, w_out*Co) banded matrices so that
        # sum_ki x_flat[rows shifted by ki] @ banded[ki] == valid 2D conv, flat lanes.
        w = np.asarray(w, f32)
        co_n, ci_n, kh, kw = w.shape
        out = np.zeros((kh, w_in, ci_n, w_out, co_n), f32)
        for ki in range(kh):
            for kj in range(kw):
                wk = w[:, :, ki, kj].T                        # (Ci, Co)
                for j in range(w_out):
                    out[ki, j + kj, :, j, :] = wk
        return out.reshape(kh, w_in * ci_n, w_out * co_n)

    def pool_w(c, w_out):
        # (2*w_out*c, w_out*c): 0.5 where same channel and input column pair -> output column.
        m = np.zeros((2 * w_out * c, w_out * c), f32)
        for j in range(2 * w_out):
            for ch in range(c):
                m[j * c + ch, (j // 2) * c + ch] = 0.5
        return m

    def pool_h_block(h_out):
        # Height-pool over batch-stacked rows (row = i*B + b), block-diagonal per image;
        # output rows come out as o*B + b (height-major, batch-minor).
        m = np.zeros((h_out * B, 2 * h_out * B), f32)
        for o in range(h_out):
            for b in range(B):
                m[o * B + b, (2 * o) * B + b] = 0.5
                m[o * B + b, (2 * o + 1) * B + b] = 0.5
        return m

    def chan_sum(c, w):
        # (w*c, c): sums the flat [j*c + ch] lanes per channel.
        m = np.zeros((w * c, c), f32)
        for j in range(w):
            for ch in range(c):
                m[j * c + ch, ch] = 1.0
        return m

    wb1 = banded(p["w1"], 32, 28)                             # (5, 32, 168)
    w1cat = wb1.reshape(5 * 32, 28 * 6)                       # (160, 168), rows = ki*32 + col

    # fc1 rows re-ordered from PyTorch's c*25 + ih*5 + jw flatten to our (jw*16 + c)
    # lane layout, split per height index ih.
    fw1 = np.asarray(p["fw1"], f32)                           # (120, 400)
    w1r = np.zeros((5, 80, 120), f32)
    for ih in range(5):
        for jw in range(5):
            for co in range(16):
                w1r[ih, jw * 16 + co, :] = fw1[:, co * 25 + ih * 5 + jw]

    w3t_pad = np.zeros((84, PAD_OUT), f32)
    w3t_pad[:, :NUM_CLASSES] = np.asarray(p["fw3"], f32).T
    fb3_pad = np.zeros((1, PAD_OUT), f32)
    fb3_pad[0, :NUM_CLASSES] = np.asarray(p["fb3"], f32)

    arrs = {
        "w1c": w1cat,                                                     # (160, 168)
        "wb2": banded(p["w2"], 14, 10),                                   # (5, 84, 160)
        "bn1": np.stack([np.asarray(p["g1"], f32), np.asarray(p["be1"], f32)]),   # (2, 6)
        "bn2": np.stack([np.asarray(p["g2"], f32), np.asarray(p["be2"], f32)]),   # (2, 16)
        "sel1": chan_sum(6, 28),                                          # (168, 6)
        "bc1": chan_sum(6, 14).T.copy(),                                  # (6, 84)
        "pw1": pool_w(6, 14),                                             # (168, 84)
        "ah1": pool_h_block(14),                                          # (14B, 28B)
        "sel2": chan_sum(16, 10),                                         # (160, 16)
        "bc2": chan_sum(16, 5).T.copy(),                                  # (16, 80)
        "pw2": pool_w(16, 5),                                             # (160, 80)
        "ah2": pool_h_block(5),                                           # (5B, 10B)
        "w1r": w1r,                                                       # (5, 80, 120)
        "fb1": np.asarray(p["fb1"], f32).reshape(1, 120),
        "w2t": np.asarray(p["fw2"], f32).T.copy(),                        # (120, 84)
        "fb2": np.asarray(p["fb2"], f32).reshape(1, 84),
        "w3t": w3t_pad,                                                   # (84, 128)
        "fb3": fb3_pad,                                                   # (1, 128)
        # p["cb1"], p["cb2"] intentionally unused: exact no-ops under train-mode BN.
    }
    return {k: jnp.asarray(v) for k, v in arrs.items()}


def build_lenet_forward(params, batch_size):
    B = batch_size
    prep = prepare_params(params, B)
    order = ["w1c", "wb2", "bn1", "bn2", "sel1", "bc1", "pw1", "ah1",
             "sel2", "bc2", "pw2", "ah2", "w1r", "fb1", "w2t", "fb2", "w3t", "fb3"]
    weights = [prep[k] for k in order]

    vmem = pl.BlockSpec(memory_space=pltpu.MemorySpace.VMEM)
    fused = pl.pallas_call(
        _lenet_fused_kernel,
        out_shape=jax.ShapeDtypeStruct((B, PAD_OUT), jnp.float32),
        in_specs=[vmem] * (1 + len(order)),
        out_specs=vmem,
    )

    @jax.jit
    def forward(x_nchw):
        x = x_nchw[:, 0, :, :]                                # (B, 32, 32); C_in == 1
        # 5 vertically shifted copies, lane-concatenated; rows height-major (i*B + b).
        shifts = jnp.stack([x[:, ki:ki + 28, :] for ki in range(5)], axis=2)   # (B, 28, 5, 32)
        xs1 = shifts.transpose(1, 0, 2, 3).reshape(28 * B, 5 * 32)             # (28B, 160)
        out = fused(xs1, *weights)
        return out[:, :NUM_CLASSES]

    return forward


# ------------------------- pure-JAX reference (validation only) -------------------------

def lenet_forward_reference(x_nchw, p):
    hi = jax.lax.Precision.HIGHEST

    def conv(x, w, b):
        y = jax.lax.conv_general_dilated(
            x, w, window_strides=(1, 1), padding="VALID",
            dimension_numbers=("NCHW", "OIHW", "NCHW"), precision=hi)
        return y + b[None, :, None, None]

    def bn(x, g, be):
        mu = jnp.mean(x, axis=(0, 2, 3), keepdims=True)
        var = jnp.mean((x - mu) ** 2, axis=(0, 2, 3), keepdims=True)
        return g[None, :, None, None] * (x - mu) * jax.lax.rsqrt(var + EPS) + be[None, :, None, None]

    def avgpool(x):
        s = jax.lax.reduce_window(x, 0.0, jax.lax.add, (1, 1, 2, 2), (1, 1, 2, 2), "VALID")
        return s * 0.25

    h = jnp.maximum(avgpool(bn(conv(x_nchw, p["w1"], p["cb1"]), p["g1"], p["be1"])), 0.0)
    h = jnp.maximum(avgpool(bn(conv(h, p["w2"], p["cb2"]), p["g2"], p["be2"])), 0.0)
    f = h.reshape(h.shape[0], -1)
    f = jnp.dot(f, p["fw1"].T, precision=hi) + p["fb1"]
    f = jnp.dot(f, p["fw2"].T, precision=hi) + p["fb2"]
    f = jnp.dot(f, p["fw3"].T, precision=hi) + p["fb3"]
    return f


# ------------------------- deterministic parameter setup -------------------------

def init_params(key):
    ks = jax.random.split(key, 20)
    n = lambda k, shape, s: (jax.random.normal(k, shape, jnp.float32) * s)
    return {
        "w1":  n(ks[0], (6, 1, 5, 5), (1.0 / 25) ** 0.5),
        "cb1": n(ks[1], (6,), 0.1),
        "g1":  1.0 + n(ks[2], (6,), 0.1),
        "be1": n(ks[3], (6,), 0.1),
        "w2":  n(ks[4], (16, 6, 5, 5), (1.0 / 150) ** 0.5),
        "cb2": n(ks[5], (16,), 0.1),
        "g2":  1.0 + n(ks[6], (16,), 0.1),
        "be2": n(ks[7], (16,), 0.1),
        "fw1": n(ks[8], (120, 400), (1.0 / 400) ** 0.5),
        "fb1": n(ks[9], (120,), 0.1),
        "fw2": n(ks[10], (84, 120), (1.0 / 120) ** 0.5),
        "fb2": n(ks[11], (84,), 0.1),
        "fw3": n(ks[12], (NUM_CLASSES, 84), (1.0 / 84) ** 0.5),
        "fb3": n(ks[13], (NUM_CLASSES,), 0.1),
    }


if __name__ == "__main__":
    key = jax.random.PRNGKey(0)
    k_params, k_x = jax.random.split(key)
    params = init_params(k_params)
    # fc1 expects 16*5*5 features -> input is 32x32 with 1 channel.
    x = jax.random.normal(k_x, (2, 1, 32, 32), jnp.float32)

    forward = build_lenet_forward(params, batch_size=2)
    out = jax.block_until_ready(forward(x))
    assert out.shape == (2, NUM_CLASSES) and out.dtype == jnp.float32

    ref = jax.block_until_ready(lenet_forward_reference(x, params))
    assert bool(jnp.allclose(out, ref, atol=1e-3, rtol=1e-3)), (
        f"Pallas output mismatch vs JAX reference:\n{out}\nvs\n{ref}")

    print("KERNEL_OK")
</pallas_src>

<mosaic_0001>
module attributes {stable_mosaic.version = 11 : i64} {
  func.func @_lenet_fused_kernel(%arg0: memref<56x160xf32, #tpu.memory_space<vmem>>, %arg1: memref<160x168xf32, #tpu.memory_space<vmem>>, %arg2: memref<5x84x160xf32, #tpu.memory_space<vmem>>, %arg3: memref<2x6xf32, #tpu.memory_space<vmem>>, %arg4: memref<2x16xf32, #tpu.memory_space<vmem>>, %arg5: memref<168x6xf32, #tpu.memory_space<vmem>>, %arg6: memref<6x84xf32, #tpu.memory_space<vmem>>, %arg7: memref<168x84xf32, #tpu.memory_space<vmem>>, %arg8: memref<28x56xf32, #tpu.memory_space<vmem>>, %arg9: memref<160x16xf32, #tpu.memory_space<vmem>>, %arg10: memref<16x80xf32, #tpu.memory_space<vmem>>, %arg11: memref<160x80xf32, #tpu.memory_space<vmem>>, %arg12: memref<10x20xf32, #tpu.memory_space<vmem>>, %arg13: memref<5x80x120xf32, #tpu.memory_space<vmem>>, %arg14: memref<1x120xf32, #tpu.memory_space<vmem>>, %arg15: memref<120x84xf32, #tpu.memory_space<vmem>>, %arg16: memref<1x84xf32, #tpu.memory_space<vmem>>, %arg17: memref<84x128xf32, #tpu.memory_space<vmem>>, %arg18: memref<1x128xf32, #tpu.memory_space<vmem>>, %arg19: memref<2x128xf32, #tpu.memory_space<vmem>>) attributes {dimension_semantics = [], scalar_prefetch = 0 : i64, scratch_operands = 0 : i64, tpu.core_type = #tpu.core_type<tc>} {
    %c0 = arith.constant 0 : index
    %c0_0 = arith.constant 0 : index
    %0 = vector.load %arg0[%c0, %c0_0] : memref<56x160xf32, #tpu.memory_space<vmem>>, vector<56x160xf32>
    %c0_1 = arith.constant 0 : index
    %c0_2 = arith.constant 0 : index
    %1 = vector.load %arg1[%c0_1, %c0_2] : memref<160x168xf32, #tpu.memory_space<vmem>>, vector<160x168xf32>
    %cst = arith.constant dense<0.000000e+00> : vector<56x168xf32>
    %2 = tpu.matmul %0, %1, %cst {dimension_numbers = #tpu.dot_dimension_numbers<[1], [0], [0], [1], [0, 0, 1, 1], [], []>} : vector<56x160xf32>, vector<160x168xf32>, vector<56x168xf32> -> vector<56x168xf32>
    %cst_3 = arith.constant dense<0.000000e+00> : vector<168xf32>
    %3 = vector.multi_reduction <add>, %2, %cst_3 [0] : vector<56x168xf32> to vector<168xf32>
    %4 = vector.shape_cast %3 : vector<168xf32> to vector<1x168xf32>
    %5 = arith.mulf %2, %2 : vector<56x168xf32>
    %cst_4 = arith.constant dense<0.000000e+00> : vector<168xf32>
    %6 = vector.multi_reduction <add>, %5, %cst_4 [0] : vector<56x168xf32> to vector<168xf32>
    %7 = vector.shape_cast %6 : vector<168xf32> to vector<1x168xf32>
    %8 = tpu.concatenate %4, %7 in 0 : vector<1x168xf32>, vector<1x168xf32> -> vector<2x168xf32>
    %c0_5 = arith.constant 0 : index
    %c0_6 = arith.constant 0 : index
    %9 = vector.load %arg5[%c0_5, %c0_6] : memref<168x6xf32, #tpu.memory_space<vmem>>, vector<168x6xf32>
    %cst_7 = arith.constant dense<0.000000e+00> : vector<2x6xf32>
    %10 = tpu.matmul %8, %9, %cst_7 {dimension_numbers = #tpu.dot_dimension_numbers<[1], [0], [0], [1], [0, 0, 1, 1], [], []>} : vector<2x168xf32>, vector<168x6xf32>, vector<2x6xf32> -> vector<2x6xf32>
    %cst_8 = arith.constant 6.37755089E-4 : f32
    %11 = vector.broadcast %cst_8 : f32 to vector<2x6xf32>
    %12 = arith.mulf %10, %11 : vector<2x6xf32>
    %13 = vector.extract_strided_slice %12 {offsets = [0, 0], sizes = [1, 6], strides = [1, 1]} : vector<2x6xf32> to vector<1x6xf32>
    %14 = vector.extract_strided_slice %12 {offsets = [1, 0], sizes = [1, 6], strides = [1, 1]} : vector<2x6xf32> to vector<1x6xf32>
    %15 = arith.mulf %13, %13 : vector<1x6xf32>
    %16 = arith.subf %14, %15 : vector<1x6xf32>
    %c0_9 = arith.constant 0 : index
    %c0_10 = arith.constant 0 : index
    %17 = vector.load %arg3[%c0_9, %c0_10] : memref<2x6xf32, #tpu.memory_space<vmem>>, vector<1x6xf32>
    %cst_11 = arith.constant 9.99999974E-6 : f32
    %18 = vector.broadcast %cst_11 : f32 to vector<1x6xf32>
    %19 = arith.addf %16, %18 : vector<1x6xf32>
    %20 = math.rsqrt %19 : vector<1x6xf32>
    %21 = arith.mulf %17, %20 : vector<1x6xf32>
    %c1 = arith.constant 1 : index
    %c0_12 = arith.constant 0 : index
    %22 = vector.load %arg3[%c1, %c0_12] : memref<2x6xf32, #tpu.memory_space<vmem>>, vector<1x6xf32>
    %23 = arith.mulf %21, %13 : vector<1x6xf32>
    %24 = arith.subf %22, %23 : vector<1x6xf32>
    %25 = tpu.concatenate %21, %24 in 0 : vector<1x6xf32>, vector<1x6xf32> -> vector<2x6xf32>
    %c0_13 = arith.constant 0 : index
    %c0_14 = arith.constant 0 : index
    %26 = vector.load %arg6[%c0_13, %c0_14] : memref<6x84xf32, #tpu.memory_space<vmem>>, vector<6x84xf32>
    %cst_15 = arith.constant dense<0.000000e+00> : vector<2x84xf32>
    %27 = tpu.matmul %25, %26, %cst_15 {dimension_numbers = #tpu.dot_dimension_numbers<[1], [0], [0], [1], [0, 0, 1, 1], [], []>} : vector<2x6xf32>, vector<6x84xf32>, vector<2x84xf32> -> vector<2x84xf32>
    %28 = vector.extract_strided_slice %27 {offsets = [0, 0], sizes = [1, 84], strides = [1, 1]} : vector<2x84xf32> to vector<1x84xf32>
    %29 = vector.extract_strided_slice %27 {offsets = [1, 0], sizes = [1, 84], strides = [1, 1]} : vector<2x84xf32> to vector<1x84xf32>
    %c0_16 = arith.constant 0 : index
    %c0_17 = arith.constant 0 : index
    %30 = vector.load %arg8[%c0_16, %c0_17] : memref<28x56xf32, #tpu.memory_space<vmem>>, vector<28x56xf32>
    %c0_18 = arith.constant 0 : index
    %c0_19 = arith.constant 0 : index
    %31 = vector.load %arg7[%c0_18, %c0_19] : memref<168x84xf32, #tpu.memory_space<vmem>>, vector<168x84xf32>
    %cst_20 = arith.constant dense<0.000000e+00> : vector<56x84xf32>
    %32 = tpu.matmul %2, %31, %cst_20 {dimension_numbers = #tpu.dot_dimension_numbers<[1], [0], [0], [1], [0, 0, 1, 1], [], []>} : vector<56x168xf32>, vector<168x84xf32>, vector<56x84xf32> -> vector<56x84xf32>
    %cst_21 = arith.constant dense<0.000000e+00> : vector<28x84xf32>
    %33 = tpu.matmul %30, %32, %cst_21 {dimension_numbers = #tpu.dot_dimension_numbers<[1], [0], [0], [1], [0, 0, 1, 1], [], []>} : vector<28x56xf32>, vector<56x84xf32>, vector<28x84xf32> -> vector<28x84xf32>
    %34 = vector.broadcast %28 : vector<1x84xf32> to vector<28x84xf32>
    %35 = arith.mulf %33, %34 : vector<28x84xf32>
    %36 = vector.broadcast %29 : vector<1x84xf32> to vector<28x84xf32>
    %37 = arith.addf %35, %36 : vector<28x84xf32>
    %cst_22 = arith.constant 0.000000e+00 : f32
    %38 = vector.broadcast %cst_22 : f32 to vector<28x84xf32>
    %39 = arith.maximumf %37, %38 : vector<28x84xf32>
    %40 = vector.extract_strided_slice %39 {offsets = [0, 0], sizes = [20, 84], strides = [1, 1]} : vector<28x84xf32> to vector<20x84xf32>
    %c0_23 = arith.constant 0 : index
    %c0_24 = arith.constant 0 : index
    %c0_25 = arith.constant 0 : index
    %41 = vector.load %arg2[%c0_23, %c0_24, %c0_25] : memref<5x84x160xf32, #tpu.memory_space<vmem>>, vector<1x84x160xf32>
    %42 = vector.shape_cast %41 : vector<1x84x160xf32> to vector<84x160xf32>
    %cst_26 = arith.constant dense<0.000000e+00> : vector<20x160xf32>
    %43 = tpu.matmul %40, %42, %cst_26 {dimension_numbers = #tpu.dot_dimension_numbers<[1], [0], [0], [1], [0, 0, 1, 1], [], []>} : vector<20x84xf32>, vector<84x160xf32>, vector<20x160xf32> -> vector<20x160xf32>
    %44 = vector.extract_strided_slice %39 {offsets = [2, 0], sizes = [20, 84], strides = [1, 1]} : vector<28x84xf32> to vector<20x84xf32>
    %c1_27 = arith.constant 1 : index
    %c0_28 = arith.constant 0 : index
    %c0_29 = arith.constant 0 : index
    %45 = vector.load %arg2[%c1_27, %c0_28, %c0_29] : memref<5x84x160xf32, #tpu.memory_space<vmem>>, vector<1x84x160xf32>
    %46 = vector.shape_cast %45 : vector<1x84x160xf32> to vector<84x160xf32>
    %cst_30 = arith.constant dense<0.000000e+00> : vector<20x160xf32>
    %47 = tpu.matmul %44, %46, %cst_30 {dimension_numbers = #tpu.dot_dimension_numbers<[1], [0], [0], [1], [0, 0, 1, 1], [], []>} : vector<20x84xf32>, vector<84x160xf32>, vector<20x160xf32> -> vector<20x160xf32>
    %48 = arith.addf %43, %47 : vector<20x160xf32>
    %49 = vector.extract_strided_slice %39 {offsets = [4, 0], sizes = [20, 84], strides = [1, 1]} : vector<28x84xf32> to vector<20x84xf32>
    %c2 = arith.constant 2 : index
    %c0_31 = arith.constant 0 : index
    %c0_32 = arith.constant 0 : index
    %50 = vector.load %arg2[%c2, %c0_31, %c0_32] : memref<5x84x160xf32, #tpu.memory_space<vmem>>, vector<1x84x160xf32>
    %51 = vector.shape_cast %50 : vector<1x84x160xf32> to vector<84x160xf32>
    %cst_33 = arith.constant dense<0.000000e+00> : vector<20x160xf32>
    %52 = tpu.matmul %49, %51, %cst_33 {dimension_numbers = #tpu.dot_dimension_numbers<[1], [0], [0], [1], [0, 0, 1, 1], [], []>} : vector<20x84xf32>, vector<84x160xf32>, vector<20x160xf32> -> vector<20x160xf32>
    %53 = arith.addf %48, %52 : vector<20x160xf32>
    %54 = vector.extract_strided_slice %39 {offsets = [6, 0], sizes = [20, 84], strides = [1, 1]} : vector<28x84xf32> to vector<20x84xf32>
    %c3 = arith.constant 3 : index
    %c0_34 = arith.constant 0 : index
    %c0_35 = arith.constant 0 : index
    %55 = vector.load %arg2[%c3, %c0_34, %c0_35] : memref<5x84x160xf32, #tpu.memory_space<vmem>>, vector<1x84x160xf32>
    %56 = vector.shape_cast %55 : vector<1x84x160xf32> to vector<84x160xf32>
    %cst_36 = arith.constant dense<0.000000e+00> : vector<20x160xf32>
    %57 = tpu.matmul %54, %56, %cst_36 {dimension_numbers = #tpu.dot_dimension_numbers<[1], [0], [0], [1], [0, 0, 1, 1], [], []>} : vector<20x84xf32>, vector<84x160xf32>, vector<20x160xf32> -> vector<20x160xf32>
    %58 = arith.addf %53, %57 : vector<20x160xf32>
    %59 = vector.extract_strided_slice %39 {offsets = [8, 0], sizes = [20, 84], strides = [1, 1]} : vector<28x84xf32> to vector<20x84xf32>
    %c4 = arith.constant 4 : index
    %c0_37 = arith.constant 0 : index
    %c0_38 = arith.constant 0 : index
    %60 = vector.load %arg2[%c4, %c0_37, %c0_38] : memref<5x84x160xf32, #tpu.memory_space<vmem>>, vector<1x84x160xf32>
    %61 = vector.shape_cast %60 : vector<1x84x160xf32> to vector<84x160xf32>
    %cst_39 = arith.constant dense<0.000000e+00> : vector<20x160xf32>
    %62 = tpu.matmul %59, %61, %cst_39 {dimension_numbers = #tpu.dot_dimension_numbers<[1], [0], [0], [1], [0, 0, 1, 1], [], []>} : vector<20x84xf32>, vector<84x160xf32>, vector<20x160xf32> -> vector<20x160xf32>
    %63 = arith.addf %58, %62 : vector<20x160xf32>
    %cst_40 = arith.constant dense<0.000000e+00> : vector<160xf32>
    %64 = vector.multi_reduction <add>, %63, %cst_40 [0] : vector<20x160xf32> to vector<160xf32>
    %65 = vector.shape_cast %64 : vector<160xf32> to vector<1x160xf32>
    %66 = arith.mulf %63, %63 : vector<20x160xf32>
    %cst_41 = arith.constant dense<0.000000e+00> : vector<160xf32>
    %67 = vector.multi_reduction <add>, %66, %cst_41 [0] : vector<20x160xf32> to vector<160xf32>
    %68 = vector.shape_cast %67 : vector<160xf32> to vector<1x160xf32>
    %69 = tpu.concatenate %65, %68 in 0 : vector<1x160xf32>, vector<1x160xf32> -> vector<2x160xf32>
    %c0_42 = arith.constant 0 : index
    %c0_43 = arith.constant 0 : index
    %70 = vector.load %arg9[%c0_42, %c0_43] : memref<160x16xf32, #tpu.memory_space<vmem>>, vector<160x16xf32>
    %cst_44 = arith.constant dense<0.000000e+00> : vector<2x16xf32>
    %71 = tpu.matmul %69, %70, %cst_44 {dimension_numbers = #tpu.dot_dimension_numbers<[1], [0], [0], [1], [0, 0, 1, 1], [], []>} : vector<2x160xf32>, vector<160x16xf32>, vector<2x16xf32> -> vector<2x16xf32>
    %cst_45 = arith.constant 5.000000e-03 : f32
    %72 = vector.broadcast %cst_45 : f32 to vector<2x16xf32>
    %73 = arith.mulf %71, %72 : vector<2x16xf32>
    %74 = vector.extract_strided_slice %73 {offsets = [0, 0], sizes = [1, 16], strides = [1, 1]} : vector<2x16xf32> to vector<1x16xf32>
    %75 = vector.extract_strided_slice %73 {offsets = [1, 0], sizes = [1, 16], strides = [1, 1]} : vector<2x16xf32> to vector<1x16xf32>
    %76 = arith.mulf %74, %74 : vector<1x16xf32>
    %77 = arith.subf %75, %76 : vector<1x16xf32>
    %c0_46 = arith.constant 0 : index
    %c0_47 = arith.constant 0 : index
    %78 = vector.load %arg4[%c0_46, %c0_47] : memref<2x16xf32, #tpu.memory_space<vmem>>, vector<1x16xf32>
    %cst_48 = arith.constant 9.99999974E-6 : f32
    %79 = vector.broadcast %cst_48 : f32 to vector<1x16xf32>
    %80 = arith.addf %77, %79 : vector<1x16xf32>
    %81 = math.rsqrt %80 : vector<1x16xf32>
    %82 = arith.mulf %78, %81 : vector<1x16xf32>
    %c1_49 = arith.constant 1 : index
    %c0_50 = arith.constant 0 : index
    %83 = vector.load %arg4[%c1_49, %c0_50] : memref<2x16xf32, #tpu.memory_space<vmem>>, vector<1x16xf32>
    %84 = arith.mulf %82, %74 : vector<1x16xf32>
    %85 = arith.subf %83, %84 : vector<1x16xf32>
    %86 = tpu.concatenate %82, %85 in 0 : vector<1x16xf32>, vector<1x16xf32> -> vector<2x16xf32>
    %c0_51 = arith.constant 0 : index
    %c0_52 = arith.constant 0 : index
    %87 = vector.load %arg10[%c0_51, %c0_52] : memref<16x80xf32, #tpu.memory_space<vmem>>, vector<16x80xf32>
    %cst_53 = arith.constant dense<0.000000e+00> : vector<2x80xf32>
    %88 = tpu.matmul %86, %87, %cst_53 {dimension_numbers = #tpu.dot_dimension_numbers<[1], [0], [0], [1], [0, 0, 1, 1], [], []>} : vector<2x16xf32>, vector<16x80xf32>, vector<2x80xf32> -> vector<2x80xf32>
    %89 = vector.extract_strided_slice %88 {offsets = [0, 0], sizes = [1, 80], strides = [1, 1]} : vector<2x80xf32> to vector<1x80xf32>
    %90 = vector.extract_strided_slice %88 {offsets = [1, 0], sizes = [1, 80], strides = [1, 1]} : vector<2x80xf32> to vector<1x80xf32>
    %c0_54 = arith.constant 0 : index
    %c0_55 = arith.constant 0 : index
    %91 = vector.load %arg12[%c0_54, %c0_55] : memref<10x20xf32, #tpu.memory_space<vmem>>, vector<10x20xf32>
    %c0_56 = arith.constant 0 : index
    %c0_57 = arith.constant 0 : index
    %92 = vector.load %arg11[%c0_56, %c0_57] : memref<160x80xf32, #tpu.memory_space<vmem>>, vector<160x80xf32>
    %cst_58 = arith.constant dense<0.000000e+00> : vector<20x80xf32>
    %93 = tpu.matmul %63, %92, %cst_58 {dimension_numbers = #tpu.dot_dimension_numbers<[1], [0], [0], [1], [0, 0, 1, 1], [], []>} : vector<20x160xf32>, vector<160x80xf32>, vector<20x80xf32> -> vector<20x80xf32>
    %cst_59 = arith.constant dense<0.000000e+00> : vector<10x80xf32>
    %94 = tpu.matmul %91, %93, %cst_59 {dimension_numbers = #tpu.dot_dimension_numbers<[1], [0], [0], [1], [0, 0, 1, 1], [], []>} : vector<10x20xf32>, vector<20x80xf32>, vector<10x80xf32> -> vector<10x80xf32>
    %95 = vector.broadcast %89 : vector<1x80xf32> to vector<10x80xf32>
    %96 = arith.mulf %94, %95 : vector<10x80xf32>
    %97 = vector.broadcast %90 : vector<1x80xf32> to vector<10x80xf32>
    %98 = arith.addf %96, %97 : vector<10x80xf32>
    %cst_60 = arith.constant 0.000000e+00 : f32
    %99 = vector.broadcast %cst_60 : f32 to vector<10x80xf32>
    %100 = arith.maximumf %98, %99 : vector<10x80xf32>
    %101 = vector.extract_strided_slice %100 {offsets = [0, 0], sizes = [2, 80], strides = [1, 1]} : vector<10x80xf32> to vector<2x80xf32>
    %c0_61 = arith.constant 0 : index
    %c0_62 = arith.constant 0 : index
    %c0_63 = arith.constant 0 : index
    %102 = vector.load %arg13[%c0_61, %c0_62, %c0_63] : memref<5x80x120xf32, #tpu.memory_space<vmem>>, vector<1x80x120xf32>
    %103 = vector.shape_cast %102 : vector<1x80x120xf32> to vector<80x120xf32>
    %cst_64 = arith.constant dense<0.000000e+00> : vector<2x120xf32>
    %104 = tpu.matmul %101, %103, %cst_64 {dimension_numbers = #tpu.dot_dimension_numbers<[1], [0], [0], [1], [0, 0, 1, 1], [], []>} : vector<2x80xf32>, vector<80x120xf32>, vector<2x120xf32> -> vector<2x120xf32>
    %105 = vector.extract_strided_slice %100 {offsets = [2, 0], sizes = [2, 80], strides = [1, 1]} : vector<10x80xf32> to vector<2x80xf32>
    %c1_65 = arith.constant 1 : index
    %c0_66 = arith.constant 0 : index
    %c0_67 = arith.constant 0 : index
    %106 = vector.load %arg13[%c1_65, %c0_66, %c0_67] : memref<5x80x120xf32, #tpu.memory_space<vmem>>, vector<1x80x120xf32>
    %107 = vector.shape_cast %106 : vector<1x80x120xf32> to vector<80x120xf32>
    %cst_68 = arith.constant dense<0.000000e+00> : vector<2x120xf32>
    %108 = tpu.matmul %105, %107, %cst_68 {dimension_numbers = #tpu.dot_dimension_numbers<[1], [0], [0], [1], [0, 0, 1, 1], [], []>} : vector<2x80xf32>, vector<80x120xf32>, vector<2x120xf32> -> vector<2x120xf32>
    %109 = arith.addf %104, %108 : vector<2x120xf32>
    %110 = vector.extract_strided_slice %100 {offsets = [4, 0], sizes = [2, 80], strides = [1, 1]} : vector<10x80xf32> to vector<2x80xf32>
    %c2_69 = arith.constant 2 : index
    %c0_70 = arith.constant 0 : index
    %c0_71 = arith.constant 0 : index
    %111 = vector.load %arg13[%c2_69, %c0_70, %c0_71] : memref<5x80x120xf32, #tpu.memory_space<vmem>>, vector<1x80x120xf32>
    %112 = vector.shape_cast %111 : vector<1x80x120xf32> to vector<80x120xf32>
    %cst_72 = arith.constant dense<0.000000e+00> : vector<2x120xf32>
    %113 = tpu.matmul %110, %112, %cst_72 {dimension_numbers = #tpu.dot_dimension_numbers<[1], [0], [0], [1], [0, 0, 1, 1], [], []>} : vector<2x80xf32>, vector<80x120xf32>, vector<2x120xf32> -> vector<2x120xf32>
    %114 = arith.addf %109, %113 : vector<2x120xf32>
    %115 = vector.extract_strided_slice %100 {offsets = [6, 0], sizes = [2, 80], strides = [1, 1]} : vector<10x80xf32> to vector<2x80xf32>
    %c3_73 = arith.constant 3 : index
    %c0_74 = arith.constant 0 : index
    %c0_75 = arith.constant 0 : index
    %116 = vector.load %arg13[%c3_73, %c0_74, %c0_75] : memref<5x80x120xf32, #tpu.memory_space<vmem>>, vector<1x80x120xf32>
    %117 = vector.shape_cast %116 : vector<1x80x120xf32> to vector<80x120xf32>
    %cst_76 = arith.constant dense<0.000000e+00> : vector<2x120xf32>
    %118 = tpu.matmul %115, %117, %cst_76 {dimension_numbers = #tpu.dot_dimension_numbers<[1], [0], [0], [1], [0, 0, 1, 1], [], []>} : vector<2x80xf32>, vector<80x120xf32>, vector<2x120xf32> -> vector<2x120xf32>
    %119 = arith.addf %114, %118 : vector<2x120xf32>
    %120 = vector.extract_strided_slice %100 {offsets = [8, 0], sizes = [2, 80], strides = [1, 1]} : vector<10x80xf32> to vector<2x80xf32>
    %c4_77 = arith.constant 4 : index
    %c0_78 = arith.constant 0 : index
    %c0_79 = arith.constant 0 : index
    %121 = vector.load %arg13[%c4_77, %c0_78, %c0_79] : memref<5x80x120xf32, #tpu.memory_space<vmem>>, vector<1x80x120xf32>
    %122 = vector.shape_cast %121 : vector<1x80x120xf32> to vector<80x120xf32>
    %cst_80 = arith.constant dense<0.000000e+00> : vector<2x120xf32>
    %123 = tpu.matmul %120, %122, %cst_80 {dimension_numbers = #tpu.dot_dimension_numbers<[1], [0], [0], [1], [0, 0, 1, 1], [], []>} : vector<2x80xf32>, vector<80x120xf32>, vector<2x120xf32> -> vector<2x120xf32>
    %124 = arith.addf %119, %123 : vector<2x120xf32>
    %c0_81 = arith.constant 0 : index
    %c0_82 = arith.constant 0 : index
    %125 = vector.load %arg14[%c0_81, %c0_82] : memref<1x120xf32, #tpu.memory_space<vmem>>, vector<1x120xf32>
    %126 = vector.broadcast %125 : vector<1x120xf32> to vector<2x120xf32>
    %127 = arith.addf %124, %126 : vector<2x120xf32>
    %c0_83 = arith.constant 0 : index
    %c0_84 = arith.constant 0 : index
    %128 = vector.load %arg15[%c0_83, %c0_84] : memref<120x84xf32, #tpu.memory_space<vmem>>, vector<120x84xf32>
    %cst_85 = arith.constant dense<0.000000e+00> : vector<2x84xf32>
    %129 = tpu.matmul %127, %128, %cst_85 {dimension_numbers = #tpu.dot_dimension_numbers<[1], [0], [0], [1], [0, 0, 1, 1], [], []>} : vector<2x120xf32>, vector<120x84xf32>, vector<2x84xf32> -> vector<2x84xf32>
    %c0_86 = arith.constant 0 : index
    %c0_87 = arith.constant 0 : index
    %130 = vector.load %arg16[%c0_86, %c0_87] : memref<1x84xf32, #tpu.memory_space<vmem>>, vector<1x84xf32>
    %131 = vector.broadcast %130 : vector<1x84xf32> to vector<2x84xf32>
    %132 = arith.addf %129, %131 : vector<2x84xf32>
    %c0_88 = arith.constant 0 : index
    %c0_89 = arith.constant 0 : index
    %133 = vector.load %arg17[%c0_88, %c0_89] : memref<84x128xf32, #tpu.memory_space<vmem>>, vector<84x128xf32>
    %cst_90 = arith.constant dense<0.000000e+00> : vector<2x128xf32>
    %134 = tpu.matmul %132, %133, %cst_90 {dimension_numbers = #tpu.dot_dimension_numbers<[1], [0], [0], [1], [0, 0, 1, 1], [], []>} : vector<2x84xf32>, vector<84x128xf32>, vector<2x128xf32> -> vector<2x128xf32>
    %c0_91 = arith.constant 0 : index
    %c0_92 = arith.constant 0 : index
    %135 = vector.load %arg18[%c0_91, %c0_92] : memref<1x128xf32, #tpu.memory_space<vmem>>, vector<1x128xf32>
    %136 = vector.broadcast %135 : vector<1x128xf32> to vector<2x128xf32>
    %137 = arith.addf %134, %136 : vector<2x128xf32>
    %c0_93 = arith.constant 0 : index
    %c0_94 = arith.constant 0 : index
    %138 = vector.load %arg19[%c0_93, %c0_94] : memref<2x128xf32, #tpu.memory_space<vmem>>, vector<2x128xf32>
    tpu.vector_store %arg19[%c0_93, %c0_94], %137 {strides = array<i32>} : memref<2x128xf32, #tpu.memory_space<vmem>>, vector<2x128xf32>,
    return
  }
}

</mosaic_0001>

<llo_original>
// kernel: forward.1
$region0: #{forward.1}
  #allocation0 [shape = 'u32[]', space=smem, size = 0x4, offset = 0x4, fixed_abs, tag = 'smem constant byte address 0x4 - core index']
  #allocation1 [shape = 'u32[72,128]{1,0:T(1,128)}', space=vmem, size = 0x9000, scoped, tag = 'internal scratch']
  %s0 = inlined_call_operand.vmem [shape: f32[56,160], index: 0, kind: input, shape index: {}]
  %s1 = inlined_call_operand.vmem [shape: f32[160,168], index: 1, kind: input, shape index: {}]
  %s2 = inlined_call_operand.vmem [shape: f32[5,84,160], index: 2, kind: input, shape index: {}]
  %s3 = inlined_call_operand.hbm [shape: f32[2,6], index: 3, kind: input, shape index: {}]
  %s4 = inlined_call_operand.hbm [shape: f32[2,16], index: 4, kind: input, shape index: {}]
  %s5 = inlined_call_operand.hbm [shape: f32[168,6], index: 5, kind: input, shape index: {}]
  %s6 = inlined_call_operand.hbm [shape: f32[6,84], index: 6, kind: input, shape index: {}]
  %s7 = inlined_call_operand.vmem [shape: f32[168,84], index: 7, kind: input, shape index: {}]
  %s8 = inlined_call_operand.hbm [shape: f32[28,56], index: 8, kind: input, shape index: {}]
  %s9 = inlined_call_operand.hbm [shape: f32[160,16], index: 9, kind: input, shape index: {}]
  %s10 = inlined_call_operand.hbm [shape: f32[16,80], index: 10, kind: input, shape index: {}]
  %s11 = inlined_call_operand.hbm [shape: f32[160,80], index: 11, kind: input, shape index: {}]
  %s12 = inlined_call_operand.vmem [shape: f32[10,20], index: 12, kind: input, shape index: {}]
  %s13 = inlined_call_operand.vmem [shape: f32[5,80,120], index: 13, kind: input, shape index: {}]
  %s14 = inlined_call_operand.hbm [shape: f32[1,120], index: 14, kind: input, shape index: {}]
  %s15 = inlined_call_operand.vmem [shape: f32[120,84], index: 15, kind: input, shape index: {}]
  %s16 = inlined_call_operand.hbm [shape: f32[1,84], index: 16, kind: input, shape index: {}]
  %s17 = inlined_call_operand.hbm [shape: f32[84,128], index: 17, kind: input, shape index: {}]
  %s18 = inlined_call_operand.hbm [shape: f32[1,128], index: 18, kind: input, shape index: {}]
  %s19 = inlined_call_operand.hbm [shape: f32[2,128], index: 19, kind: output, shape index: {}]
  %s20 = sld [smem:[#allocation0]]
  $region134: #{forward.1} parent=0
    _
  %s22 = ssub.s32 1, %s20
  %s23 = scalar_select 0, %s22, %s20
  $region1: #{forward.1} parent=0
    #allocation2 [shape = 'u8[1024]{0}', space=vmem, size = 0x400, scoped, tag = 'input window, operand 3, single buffered']
    #allocation3 [shape = 's32[1]{0}', space=sflag, size = 0x4, scoped, tag = 'scoped memory for forward.1']
    #allocation4 [shape = 's32[1]{0}', space=sflag, size = 0x4, scoped, tag = 'scoped memory for forward.1']
    #allocation5 [shape = 'u8[1024]{0}', space=vmem, size = 0x400, scoped, tag = 'input window, operand 4, single buffered']
    #allocation6 [shape = 's32[1]{0}', space=sflag, size = 0x4, scoped, tag = 'scoped memory for forward.1']
    #allocation7 [shape = 'u8[86016]{0}', space=vmem, size = 0x15000, scoped, tag = 'input window, operand 5, single buffered']
    #allocation8 [shape = 'u8[4096]{0}', space=vmem, size = 0x1000, scoped, tag = 'input window, operand 6, single buffered']
    #allocation9 [shape = 's32[1]{0}', space=sflag, size = 0x4, scoped, tag = 'scoped memory for forward.1']
    #allocation10 [shape = 'u8[16384]{0}', space=vmem, size = 0x4000, scoped, tag = 'input window, operand 8, single buffered']
    #allocation11 [shape = 'u8[81920]{0}', space=vmem, size = 0x14000, scoped, tag = 'input window, operand 9, single buffered']
    #allocation12 [shape = 's32[1]{0}', space=sflag, size = 0x4, scoped, tag = 'scoped memory for forward.1']
    #allocation13 [shape = 'u8[8192]{0}', space=vmem, size = 0x2000, scoped, tag = 'input window, operand 10, single buffered']
    #allocation14 [shape = 'u8[81920]{0}', space=vmem, size = 0x14000, scoped, tag = 'input window, operand 11, single buffered']
    #allocation15 [shape = 's32[1]{0}', space=sflag, size = 0x4, scoped, tag = 'scoped memory for forward.1']
    #allocation16 [shape = 'u8[512]{0}', space=vmem, size = 0x400, scoped, tag = 'input window, operand 14, single buffered']
    #allocation17 [shape = 'u8[512]{0}', space=vmem, size = 0x400, scoped, tag = 'input window, operand 16, single buffered']
    #allocation18 [shape = 's32[1]{0}', space=sflag, size = 0x4, scoped, tag = 'scoped memory for forward.1']
    #allocation19 [shape = 'u8[45056]{0}', space=vmem, size = 0xb000, scoped, tag = 'input window, operand 17, single buffered']
    #allocation20 [shape = 'u8[512]{0}', space=vmem, size = 0x400, scoped, tag = 'input window, operand 18, single buffered']
    #allocation21 [shape = 's32[1]{0}', space=sflag, size = 0x4, scoped, tag = 'scoped memory for forward.1']
    #allocation22 [shape = 'u8[1024]{0}', space=vmem, size = 0x400, scoped, tag = 'output window, operand 0, single buffered']
    %24 = vsyncpa [#allocation3], 0
    %25 = vsyncpa [#allocation6], 0
    %26 = vsyncpa [#allocation9], 0
    %27 = vsyncpa [#allocation12], 0
    %28 = vsyncpa [#allocation15], 0
    %29 = vsyncpa [#allocation18], 0
    %30 = vsyncpa [#allocation21], 0
    %31 = vsyncpa [#allocation4], 0
    // Predicated region
    $region2: #{forward.1} parent=1 // pred_check
      _
    $region3: #{forward.1} parent=1 // pred_check_branch
      %33 = sbr.rel (0) target = $region5
    $region4: #{forward.1} parent=1 // pred_region
      _
    $region5: #{forward.1} parent=1 // pred_fallthru
      _
    // Predicated region
    $region6: #{forward.1} parent=1 // pred_check
      _
    $region7: #{forward.1} parent=1 // pred_check_branch
      %35 = sbr.rel (0) target = $region9
    $region8: #{forward.1} parent=1 // pred_region
      _
    $region9: #{forward.1} parent=1 // pred_fallthru
      _
    // Predicated region
    $region10: #{forward.1} parent=1 // pred_check
      _
    $region11: #{forward.1} parent=1 // pred_check_branch
      %37 = sbr.rel (0) target = $region13
    $region12: #{forward.1} parent=1 // pred_region
      _
    $region13: #{forward.1} parent=1 // pred_fallthru
      _
    // Predicated region
    $region14: #{forward.1} parent=1 // pred_check
      _
    $region15: #{forward.1} parent=1 // pred_check_branch
      %39 = sbr.rel (0) target = $region17
    $region16: #{forward.1} parent=1 // pred_region
      %41 = vsyncadd [#allocation3], 0
      %s43 = sshll.u32 %s3, 4
      %s44 = int_to_ptr.hbm [resolvable:$true] %s43
      %s45 = sshll.u32 [#allocation2], 4
      %s46 = int_to_ptr.vmem [resolvable:$true] %s45
      %48 = dma.hbm_to_vmem [thread:$0]  %s44, 32, %s46, [#allocation3]
    $region17: #{forward.1} parent=1 // pred_fallthru
      _
    // Predicated region
    $region18: #{forward.1} parent=1 // pred_check
      _
    $region19: #{forward.1} parent=1 // pred_check_branch
      %50 = sbr.rel (0) target = $region21
    $region20: #{forward.1} parent=1 // pred_region
      %52 = vsyncadd [#allocation6], 0
      %s54 = sshll.u32 %s4, 4
      %s55 = int_to_ptr.hbm [resolvable:$true] %s54
      %s56 = sshll.u32 [#allocation5], 4
      %s57 = int_to_ptr.vmem [resolvable:$true] %s56
      %59 = dma.hbm_to_vmem [thread:$0]  %s55, 32, %s57, [#allocation6]
    $region21: #{forward.1} parent=1 // pred_fallthru
      _
    // Predicated region
    $region22: #{forward.1} parent=1 // pred_check
      _
    $region23: #{forward.1} parent=1 // pred_check_branch
      %61 = sbr.rel (0) target = $region25
    $region24: #{forward.1} parent=1 // pred_region
      %63 = vsyncadd [#allocation6], 0
      %s64 = sshll.u32 %s5, 4
      %s65 = int_to_ptr.hbm [resolvable:$true] %s64
      %s66 = sshll.u32 [#allocation7], 4
      %s67 = int_to_ptr.vmem [resolvable:$true] %s66
      %72 = dma.hbm_to_vmem [thread:$0]  %s65, 2688, %s67, [#allocation6], 128, 128, 8
    $region25: #{forward.1} parent=1 // pred_fallthru
      _
    // Predicated region
    $region26: #{forward.1} parent=1 // pred_check
      _
    $region27: #{forward.1} parent=1 // pred_check_branch
      %74 = sbr.rel (0) target = $region29
    $region28: #{forward.1} parent=1 // pred_region
      %76 = vsyncadd [#allocation9], 0
      %s78 = sshll.u32 %s6, 4
      %s79 = int_to_ptr.hbm [resolvable:$true] %s78
      %s80 = sshll.u32 [#allocation8], 4
      %s81 = int_to_ptr.vmem [resolvable:$true] %s80
      %83 = dma.hbm_to_vmem [thread:$0]  %s79, 128, %s81, [#allocation9]
    $region29: #{forward.1} parent=1 // pred_fallthru
      _
    // Predicated region
    $region30: #{forward.1} parent=1 // pred_check
      _
    $region31: #{forward.1} parent=1 // pred_check_branch
      %85 = sbr.rel (0) target = $region33
    $region32: #{forward.1} parent=1 // pred_region
      _
    $region33: #{forward.1} parent=1 // pred_fallthru
      _
    // Predicated region
    $region34: #{forward.1} parent=1 // pred_check
      _
    $region35: #{forward.1} parent=1 // pred_check_branch
      %87 = sbr.rel (0) target = $region37
    $region36: #{forward.1} parent=1 // pred_region
      %89 = vsyncadd [#allocation9], 0
      %s90 = sshll.u32 %s8, 4
      %s91 = int_to_ptr.hbm [resolvable:$true] %s90
      %s92 = sshll.u32 [#allocation10], 4
      %s93 = int_to_ptr.vmem [resolvable:$true] %s92
      %98 = dma.hbm_to_vmem [thread:$0]  %s91, 512, %s93, [#allocation9], 128, 128, 8
    $region37: #{forward.1} parent=1 // pred_fallthru
      _
    // Predicated region
    $region38: #{forward.1} parent=1 // pred_check
      _
    $region39: #{forward.1} parent=1 // pred_check_branch
      %100 = sbr.rel (0) target = $region41
    $region40: #{forward.1} parent=1 // pred_region
      %102 = vsyncadd [#allocation12], 0
      %s103 = sshll.u32 %s9, 4
      %s104 = int_to_ptr.hbm [resolvable:$true] %s103
      %s105 = sshll.u32 [#allocation11], 4
      %s106 = int_to_ptr.vmem [resolvable:$true] %s105
      %111 = dma.hbm_to_vmem [thread:$0]  %s104, 2560, %s106, [#allocation12], 128, 128, 8
    $region41: #{forward.1} parent=1 // pred_fallthru
      _
    // Predicated region
    $region42: #{forward.1} parent=1 // pred_check
      _
    $region43: #{forward.1} parent=1 // pred_check_branch
      %113 = sbr.rel (0) target = $region45
    $region44: #{forward.1} parent=1 // pred_region
      %115 = vsyncadd [#allocation12], 0
      %s116 = sshll.u32 %s10, 4
      %s117 = int_to_ptr.hbm [resolvable:$true] %s116
      %s118 = sshll.u32 [#allocation13], 4
      %s119 = int_to_ptr.vmem [resolvable:$true] %s118
      %124 = dma.hbm_to_vmem [thread:$0]  %s117, 256, %s119, [#allocation12], 128, 128, 8
    $region45: #{forward.1} parent=1 // pred_fallthru
      _
    // Predicated region
    $region46: #{forward.1} parent=1 // pred_check
      _
    $region47: #{forward.1} parent=1 // pred_check_branch
      %126 = sbr.rel (0) target = $region49
    $region48: #{forward.1} parent=1 // pred_region
      %128 = vsyncadd [#allocation15], 0
      %s129 = sshll.u32 %s11, 4
      %s130 = int_to_ptr.hbm [resolvable:$true] %s129
      %s131 = sshll.u32 [#allocation14], 4
      %s132 = int_to_ptr.vmem [resolvable:$true] %s131
      %137 = dma.hbm_to_vmem [thread:$0]  %s130, 2560, %s132, [#allocation15], 128, 128, 8
    $region49: #{forward.1} parent=1 // pred_fallthru
      _
    // Predicated region
    $region50: #{forward.1} parent=1 // pred_check
      _
    $region51: #{forward.1} parent=1 // pred_check_branch
      %139 = sbr.rel (0) target = $region53
    $region52: #{forward.1} parent=1 // pred_region
      _
    $region53: #{forward.1} parent=1 // pred_fallthru
      _
    // Predicated region
    $region54: #{forward.1} parent=1 // pred_check
      _
    $region55: #{forward.1} parent=1 // pred_check_branch
      %141 = sbr.rel (0) target = $region57
    $region56: #{forward.1} parent=1 // pred_region
      _
    $region57: #{forward.1} parent=1 // pred_fallthru
      _
    // Predicated region
    $region58: #{forward.1} parent=1 // pred_check
      _
    $region59: #{forward.1} parent=1 // pred_check_branch
      %143 = sbr.rel (0) target = $region61
    $region60: #{forward.1} parent=1 // pred_region
      %145 = vsyncadd [#allocation15], 0
      %s147 = sshll.u32 %s14, 4
      %s148 = int_to_ptr.hbm [resolvable:$true] %s147
      %s149 = sshll.u32 [#allocation16], 4
      %s150 = int_to_ptr.vmem [resolvable:$true] %s149
      %152 = dma.hbm_to_vmem [thread:$0]  %s148, 16, %s150, [#allocation15]
    $region61: #{forward.1} parent=1 // pred_fallthru
      _
    // Predicated region
    $region62: #{forward.1} parent=1 // pred_check
      _
    $region63: #{forward.1} parent=1 // pred_check_branch
      %154 = sbr.rel (0) target = $region65
    $region64: #{forward.1} parent=1 // pred_region
      _
    $region65: #{forward.1} parent=1 // pred_fallthru
      _
    // Predicated region
    $region66: #{forward.1} parent=1 // pred_check
      _
    $region67: #{forward.1} parent=1 // pred_check_branch
      %156 = sbr.rel (0) target = $region69
    $region68: #{forward.1} parent=1 // pred_region
      %158 = vsyncadd [#allocation18], 0
      %s160 = sshll.u32 %s16, 4
      %s161 = int_to_ptr.hbm [resolvable:$true] %s160
      %s162 = sshll.u32 [#allocation17], 4
      %s163 = int_to_ptr.vmem [resolvable:$true] %s162
      %165 = dma.hbm_to_vmem [thread:$0]  %s161, 16, %s163, [#allocation18]
    $region69: #{forward.1} parent=1 // pred_fallthru
      _
    // Predicated region
    $region70: #{forward.1} parent=1 // pred_check
      _
    $region71: #{forward.1} parent=1 // pred_check_branch
      %167 = sbr.rel (0) target = $region73
    $region72: #{forward.1} parent=1 // pred_region
      %169 = vsyncadd [#allocation18], 0
      %s170 = sshll.u32 %s17, 4
      %s171 = int_to_ptr.hbm [resolvable:$true] %s170
      %s172 = sshll.u32 [#allocation19], 4
      %s173 = int_to_ptr.vmem [resolvable:$true] %s172
      %178 = dma.hbm_to_vmem [thread:$0]  %s171, 1408, %s173, [#allocation18], 128, 128, 8
    $region73: #{forward.1} parent=1 // pred_fallthru
      _
    // Predicated region
    $region74: #{forward.1} parent=1 // pred_check
      _
    $region75: #{forward.1} parent=1 // pred_check_branch
      %180 = sbr.rel (0) target = $region77
    $region76: #{forward.1} parent=1 // pred_region
      %182 = vsyncadd [#allocation21], 0
      %s184 = sshll.u32 %s18, 4
      %s185 = int_to_ptr.hbm [resolvable:$true] %s184
      %s186 = sshll.u32 [#allocation20], 4
      %s187 = int_to_ptr.vmem [resolvable:$true] %s186
      %189 = dma.hbm_to_vmem [thread:$0]  %s185, 16, %s187, [#allocation21]
    $region77: #{forward.1} parent=1 // pred_fallthru
      _
    // Predicated region
    $region78: #{forward.1} parent=1 // pred_check
      _
    $region79: #{forward.1} parent=1 // pred_check_branch
      %191 = sbr.rel (0) target = $region81
    $region80: #{forward.1} parent=1 // pred_region
      %193 = dma.done [#allocation3], 32
    $region81: #{forward.1} parent=1 // pred_fallthru
      _
    // Predicated region
    $region82: #{forward.1} parent=1 // pred_check
      _
    $region83: #{forward.1} parent=1 // pred_check_branch
      %195 = sbr.rel (0) target = $region85
    $region84: #{forward.1} parent=1 // pred_region
      %197 = dma.done [#allocation6], 32
    $region85: #{forward.1} parent=1 // pred_fallthru
      _
    // Predicated region
    $region86: #{forward.1} parent=1 // pred_check
      _
    $region87: #{forward.1} parent=1 // pred_check_branch
      %199 = sbr.rel (0) target = $region89
    $region88: #{forward.1} parent=1 // pred_region
      %201 = dma.done [#allocation6], 2688
    $region89: #{forward.1} parent=1 // pred_fallthru
      _
    // Predicated region
    $region90: #{forward.1} parent=1 // pred_check
      _
    $region91: #{forward.1} parent=1 // pred_check_branch
      %203 = sbr.rel (0) target = $region93
    $region92: #{forward.1} parent=1 // pred_region
      %205 = dma.done [#allocation9], 128
    $region93: #{forward.1} parent=1 // pred_fallthru
      _
    // Predicated region
    $region94: #{forward.1} parent=1 // pred_check
      _
    $region95: #{forward.1} parent=1 // pred_check_branch
      %207 = sbr.rel (0) target = $region97
    $region96: #{forward.1} parent=1 // pred_region
      %209 = dma.done [#allocation9], 512
    $region97: #{forward.1} parent=1 // pred_fallthru
      _
    // Predicated region
    $region98: #{forward.1} parent=1 // pred_check
      _
    $region99: #{forward.1} parent=1 // pred_check_branch
      %211 = sbr.rel (0) target = $region101
    $region100: #{forward.1} parent=1 // pred_region
      %213 = dma.done [#allocation12], 2560
    $region101: #{forward.1} parent=1 // pred_fallthru
      _
    // Predicated region
    $region102: #{forward.1} parent=1 // pred_check
      _
    $region103: #{forward.1} parent=1 // pred_check_branch
      %215 = sbr.rel (0) target = $region105
    $region104: #{forward.1} parent=1 // pred_region
      %217 = dma.done [#allocation12], 256
    $region105: #{forward.1} parent=1 // pred_fallthru
      _
    // Predicated region
    $region106: #{forward.1} parent=1 // pred_check
      _
    $region107: #{forward.1} parent=1 // pred_check_branch
      %219 = sbr.rel (0) target = $region109
    $region108: #{forward.1} parent=1 // pred_region
      %221 = dma.done [#allocation15], 2560
    $region109: #{forward.1} parent=1 // pred_fallthru
      _
    // Predicated region
    $region110: #{forward.1} parent=1 // pred_check
      _
    $region111: #{forward.1} parent=1 // pred_check_branch
      %223 = sbr.rel (0) target = $region113
    $region112: #{forward.1} parent=1 // pred_region
      %225 = dma.done [#allocation15], 16
    $region113: #{forward.1} parent=1 // pred_fallthru
      _
    // Predicated region
    $region114: #{forward.1} parent=1 // pred_check
      _
    $region115: #{forward.1} parent=1 // pred_check_branch
      %227 = sbr.rel (0) target = $region117
    $region116: #{forward.1} parent=1 // pred_region
      %229 = dma.done [#allocation18], 16
    $region117: #{forward.1} parent=1 // pred_fallthru
      _
    // Predicated region
    $region118: #{forward.1} parent=1 // pred_check
      _
    $region119: #{forward.1} parent=1 // pred_check_branch
      %231 = sbr.rel (0) target = $region121
    $region120: #{forward.1} parent=1 // pred_region
      %233 = dma.done [#allocation18], 1408
    $region121: #{forward.1} parent=1 // pred_fallthru
      _
    // Predicated region
    $region122: #{forward.1} parent=1 // pred_check
      _
    $region123: #{forward.1} parent=1 // pred_check_branch
      %235 = sbr.rel (0) target = $region125
    $region124: #{forward.1} parent=1 // pred_region
      %237 = dma.done [#allocation21], 16
    $region125: #{forward.1} parent=1 // pred_fallthru
      _
    %v238 = vld [vmem:[%s0] sm:$0xff]
    %v239 = vld [vmem:[%s0 + $0x8] sm:$0xff]
    %v240 = vld [vmem:[%s0 + $0x10] sm:$0xff]
    %v241 = vld [vmem:[%s0 + $0x18] sm:$0xff]
    %v242 = vld [vmem:[%s0 + $0x20] sm:$0xff]
    %v243 = vld [vmem:[%s0 + $0x28] sm:$0xff]
    %v244 = vld [vmem:[%s0 + $0x30] sm:$0xff]
    %v245 = vld [vmem:[%s0 + $0x38] sm:$0xff]
    %v246 = vld [vmem:[%s0 + $0x40] sm:$0xff]
    %v247 = vld [vmem:[%s0 + $0x48] sm:$0xff]
    %v248 = vld [vmem:[%s0 + $0x50] sm:$0xff]
    %v249 = vld [vmem:[%s0 + $0x58] sm:$0xff]
    %v250 = vld [vmem:[%s0 + $0x60] sm:$0xff]
    %v251 = vld [vmem:[%s0 + $0x68] sm:$0xff]
    %v252 = vld [vmem:[%s1] sm:$0xff]
    %v253 = vld [vmem:[%s1 + $0x8] sm:$0xff]
    %v254 = vld [vmem:[%s1 + $0x10] sm:$0xff]
    %v255 = vld [vmem:[%s1 + $0x18] sm:$0xff]
    %v256 = vld [vmem:[%s1 + $0x20] sm:$0xff]
    %v257 = vld [vmem:[%s1 + $0x28] sm:$0xff]
    %v258 = vld [vmem:[%s1 + $0x30] sm:$0xff]
    %v259 = vld [vmem:[%s1 + $0x38] sm:$0xff]
    %v260 = vld [vmem:[%s1 + $0x40] sm:$0xff]
    %v261 = vld [vmem:[%s1 + $0x48] sm:$0xff]
    %v262 = vld [vmem:[%s1 + $0x50] sm:$0xff]
    %v263 = vld [vmem:[%s1 + $0x58] sm:$0xff]
    %v264 = vld [vmem:[%s1 + $0x60] sm:$0xff]
    %v265 = vld [vmem:[%s1 + $0x68] sm:$0xff]
    %v266 = vld [vmem:[%s1 + $0x70] sm:$0xff]
    %v267 = vld [vmem:[%s1 + $0x78] sm:$0xff]
    %v268 = vld [vmem:[%s1 + $0x80] sm:$0xff]
    %v269 = vld [vmem:[%s1 + $0x88] sm:$0xff]
    %v270 = vld [vmem:[%s1 + $0x90] sm:$0xff]
    %v271 = vld [vmem:[%s1 + $0x98] sm:$0xff]
    %v272 = vld [vmem:[%s1 + $0xa0] sm:$0xff]
    %v273 = vld [vmem:[%s1 + $0xa8] sm:$0xff]
    %v274 = vld [vmem:[%s1 + $0xb0] sm:$0xff]
    %v275 = vld [vmem:[%s1 + $0xb8] sm:$0xff]
    %v276 = vld [vmem:[%s1 + $0xc0] sm:$0xff]
    %v277 = vld [vmem:[%s1 + $0xc8] sm:$0xff]
    %v278 = vld [vmem:[%s1 + $0xd0] sm:$0xff]
    %v279 = vld [vmem:[%s1 + $0xd8] sm:$0xff]
    %v280 = vld [vmem:[%s1 + $0xe0] sm:$0xff]
    %v281 = vld [vmem:[%s1 + $0xe8] sm:$0xff]
    %v282 = vld [vmem:[%s1 + $0xf0] sm:$0xff]
    %v283 = vld [vmem:[%s1 + $0xf8] sm:$0xff]
    %v284 = vld [vmem:[%s1 + $0x100] sm:$0xff]
    %v285 = vld [vmem:[%s1 + $0x108] sm:$0xff]
    %v286 = vld [vmem:[%s1 + $0x110] sm:$0xff]
    %v287 = vld [vmem:[%s1 + $0x118] sm:$0xff]
    %v288 = vld [vmem:[%s1 + $0x120] sm:$0xff]
    %v289 = vld [vmem:[%s1 + $0x128] sm:$0xff]
    %v290 = vld [vmem:[%s1 + $0x130] sm:$0xff]
    %v291 = vld [vmem:[%s1 + $0x138] sm:$0xff]
    %vm292 = vcmask 261120
    %v294 = vsel %vm292, %v239, 0
    %v297 = vsel %vm292, %v241, 0
    %v300 = vsel %vm292, %v243, 0
    %v303 = vsel %vm292, %v245, 0
    %v306 = vsel %vm292, %v247, 0
    %v309 = vsel %vm292, %v249, 0
    %v312 = vsel %vm292, %v251, 0
    %314 = vmatpush.msra.mxu0 %v282
    %315 = vmatpush.msra.mxu0 %v280
    %316 = vmatpush.msra.mxu0 %v278
    %317 = vmatpush.msra.mxu0 %v276
    %318 = vmatpush.msra.mxu0 %v274
    %319 = vmatpush.msra.mxu0 %v272
    %320 = vmatpush.msra.mxu0 %v270
    %321 = vmatpush.msra.mxu0 %v268
    %322 = vmatpush.msra.mxu0 %v266
    %323 = vmatpush.msra.mxu0 %v264
    %324 = vmatpush.msra.mxu0 %v262
    %325 = vmatpush.msra.mxu0 %v260
    %326 = vmatpush.msra.mxu0 %v258
    %327 = vmatpush.msra.mxu0 %v256
    %328 = vmatpush.msra.mxu0 %v254
    %329 = vmatpush.msra.mxu0 %v252
    %330 = vmatmul.f32.gmra.mxu0 %v238
    %v331 = vpop.f32.mrf.mxu0
    %v332 = vadd.f32 0.0, %v331
    %333 = vmatmul.f32.gmra.mxu0 %v240
    %v334 = vpop.f32.mrf.mxu0
    %v335 = vadd.f32 0.0, %v334
    %336 = vmatmul.f32.gmra.mxu0 %v242
    %v337 = vpop.f32.mrf.mxu0
    %v338 = vadd.f32 0.0, %v337
    %339 = vmatmul.f32.gmra.mxu0 %v244
    %v340 = vpop.f32.mrf.mxu0
    %v341 = vadd.f32 0.0, %v340
    %342 = vmatmul.f32.gmra.mxu0 %v246
    %v343 = vpop.f32.mrf.mxu0
    %v344 = vadd.f32 0.0, %v343
    %345 = vmatmul.f32.gmra.mxu0 %v248
    %v346 = vpop.f32.mrf.mxu0
    %v347 = vadd.f32 0.0, %v346
    %348 = vmatmul.f32.gmra.mxu0 %v250
    %v349 = vpop.f32.mrf.mxu0
    %v350 = vadd.f32 0.0, %v349
    %351 = vdwg.mxu0
    %352 = vmatpush.msra.mxu0 0.0
    %353 = vmatpush.msra.mxu0 0.0
    %354 = vmatpush.msra.mxu0 0.0
    %355 = vmatpush.msra.mxu0 0.0
    %356 = vmatpush.msra.mxu0 0.0
    %357 = vmatpush.msra.mxu0 0.0
    %358 = vmatpush.msra.mxu0 0.0
    %359 = vmatpush.msra.mxu0 0.0
    %360 = vmatpush.msra.mxu0 0.0
    %361 = vmatpush.msra.mxu0 0.0
    %362 = vmatpush.msra.mxu0 0.0
    %363 = vmatpush.msra.mxu0 0.0
    %364 = vmatpush.msra.mxu0 %v290
    %365 = vmatpush.msra.mxu0 %v288
    %366 = vmatpush.msra.mxu0 %v286
    %367 = vmatpush.msra.mxu0 %v284
    %368 = vmatmul.f32.gmra.mxu0 %v294
    %v369 = vpop.f32.mrf.mxu0
    %v370 = vadd.f32 %v332, %v369
    %371 = vmatmul.f32.gmra.mxu0 %v297
    %v372 = vpop.f32.mrf.mxu0
    %v373 = vadd.f32 %v335, %v372
    %374 = vmatmul.f32.gmra.mxu0 %v300
    %v375 = vpop.f32.mrf.mxu0
    %v376 = vadd.f32 %v338, %v375
    %377 = vmatmul.f32.gmra.mxu0 %v303
    %v378 = vpop.f32.mrf.mxu0
    %v379 = vadd.f32 %v341, %v378
    %380 = vmatmul.f32.gmra.mxu0 %v306
    %v381 = vpop.f32.mrf.mxu0
    %v382 = vadd.f32 %v344, %v381
    %383 = vmatmul.f32.gmra.mxu0 %v309
    %v384 = vpop.f32.mrf.mxu0
    %v385 = vadd.f32 %v347, %v384
    %386 = vmatmul.f32.gmra.mxu0 %v312
    %v387 = vpop.f32.mrf.mxu0
    %v388 = vadd.f32 %v350, %v387
    %389 = vdwg.mxu0
    %390 = vmatpush.msra.mxu0 %v283
    %391 = vmatpush.msra.mxu0 %v281
    %392 = vmatpush.msra.mxu0 %v279
    %393 = vmatpush.msra.mxu0 %v277
    %394 = vmatpush.msra.mxu0 %v275
    %395 = vmatpush.msra.mxu0 %v273
    %396 = vmatpush.msra.mxu0 %v271
    %397 = vmatpush.msra.mxu0 %v269
    %398 = vmatpush.msra.mxu0 %v267
    %399 = vmatpush.msra.mxu0 %v265
    %400 = vmatpush.msra.mxu0 %v263
    %401 = vmatpush.msra.mxu0 %v261
    %402 = vmatpush.msra.mxu0 %v259
    %403 = vmatpush.msra.mxu0 %v257
    %404 = vmatpush.msra.mxu0 %v255
    %405 = vmatpush.msra.mxu0 %v253
    %406 = vmatmul.f32.gmra.mxu0 %v238
    %v407 = vpop.f32.mrf.mxu0
    %v408 = vadd.f32 0.0, %v407
    %409 = vmatmul.f32.gmra.mxu0 %v240
    %v410 = vpop.f32.mrf.mxu0
    %v411 = vadd.f32 0.0, %v410
    %412 = vmatmul.f32.gmra.mxu0 %v242
    %v413 = vpop.f32.mrf.mxu0
    %v414 = vadd.f32 0.0, %v413
    %415 = vmatmul.f32.gmra.mxu0 %v244
    %v416 = vpop.f32.mrf.mxu0
    %v417 = vadd.f32 0.0, %v416
    %418 = vmatmul.f32.gmra.mxu0 %v246
    %v419 = vpop.f32.mrf.mxu0
    %v420 = vadd.f32 0.0, %v419
    %421 = vmatmul.f32.gmra.mxu0 %v248
    %v422 = vpop.f32.mrf.mxu0
    %v423 = vadd.f32 0.0, %v422
    %424 = vmatmul.f32.gmra.mxu0 %v250
    %v425 = vpop.f32.mrf.mxu0
    %v426 = vadd.f32 0.0, %v425
    %427 = vdwg.mxu0
    %428 = vmatpush.msra.mxu0 0.0
    %429 = vmatpush.msra.mxu0 0.0
    %430 = vmatpush.msra.mxu0 0.0
    %431 = vmatpush.msra.mxu0 0.0
    %432 = vmatpush.msra.mxu0 0.0
    %433 = vmatpush.msra.mxu0 0.0
    %434 = vmatpush.msra.mxu0 0.0
    %435 = vmatpush.msra.mxu0 0.0
    %436 = vmatpush.msra.mxu0 0.0
    %437 = vmatpush.msra.mxu0 0.0
    %438 = vmatpush.msra.mxu0 0.0
    %439 = vmatpush.msra.mxu0 0.0
    %440 = vmatpush.msra.mxu0 %v291
    %441 = vmatpush.msra.mxu0 %v289
    %442 = vmatpush.msra.mxu0 %v287
    %443 = vmatpush.msra.mxu0 %v285
    %444 = vmatmul.f32.gmra.mxu0 %v294
    %v445 = vpop.f32.mrf.mxu0
    %v446 = vadd.f32 %v408, %v445
    %447 = vmatmul.f32.gmra.mxu0 %v297
    %v448 = vpop.f32.mrf.mxu0
    %v449 = vadd.f32 %v411, %v448
    %450 = vmatmul.f32.gmra.mxu0 %v300
    %v451 = vpop.f32.mrf.mxu0
    %v452 = vadd.f32 %v414, %v451
    %453 = vmatmul.f32.gmra.mxu0 %v303
    %v454 = vpop.f32.mrf.mxu0
    %v455 = vadd.f32 %v417, %v454
    %456 = vmatmul.f32.gmra.mxu0 %v306
    %v457 = vpop.f32.mrf.mxu0
    %v458 = vadd.f32 %v420, %v457
    %459 = vmatmul.f32.gmra.mxu0 %v309
    %v460 = vpop.f32.mrf.mxu0
    %v461 = vadd.f32 %v423, %v460
    %462 = vmatmul.f32.gmra.mxu0 %v312
    %v463 = vpop.f32.mrf.mxu0
    %v464 = vadd.f32 %v426, %v463
    %465 = vdwg.mxu0
    %v466 = vadd.f32 %v370, %v373
    %v467 = vadd.f32 %v466, %v376
    %v468 = vadd.f32 %v467, %v379
    %v469 = vadd.f32 %v468, %v382
    %v470 = vadd.f32 %v469, %v385
    %v471 = vadd.f32 %v470, %v388
    %v472 = vrot.slane %v471, 4
    %v473 = vadd.f32 %v471, %v472
    %v474 = vrot.slane %v473, 2
    %v475 = vadd.f32 %v473, %v474
    %v476 = vrot.slane %v475, 1
    %v477 = vadd.f32 %v475, %v476
    %vm478 = vcmask 326656
    %v479 = vsel %vm478, %v446, 0.0
    %v480 = vsel %vm478, %v449, 0.0
    %v481 = vadd.f32 %v479, %v480
    %v482 = vsel %vm478, %v452, 0.0
    %v483 = vadd.f32 %v481, %v482
    %v484 = vsel %vm478, %v455, 0.0
    %v485 = vadd.f32 %v483, %v484
    %v486 = vsel %vm478, %v458, 0.0
    %v487 = vadd.f32 %v485, %v486
    %v488 = vsel %vm478, %v461, 0.0
    %v489 = vadd.f32 %v487, %v488
    %v490 = vsel %vm478, %v464, 0.0
    %v491 = vadd.f32 %v489, %v490
    %v492 = vrot.slane %v491, 4
    %v493 = vadd.f32 %v491, %v492
    %v494 = vrot.slane %v493, 2
    %v495 = vadd.f32 %v493, %v494
    %v496 = vrot.slane %v495, 1
    %v497 = vadd.f32 %v495, %v496
    %v498 = vmul.f32 %v370, %v370
    %v499 = vmul.f32 %v446, %v446
    %v500 = vmul.f32 %v373, %v373
    %v501 = vmul.f32 %v449, %v449
    %v502 = vmul.f32 %v376, %v376
    %v503 = vmul.f32 %v452, %v452
    %v504 = vmul.f32 %v379, %v379
    %v505 = vmul.f32 %v455, %v455
    %v506 = vmul.f32 %v382, %v382
    %v507 = vmul.f32 %v458, %v458
    %v508 = vmul.f32 %v385, %v385
    %v509 = vmul.f32 %v461, %v461
    %v510 = vmul.f32 %v388, %v388
    %v511 = vmul.f32 %v464, %v464
    %v512 = vadd.f32 %v498, %v500
    %v513 = vadd.f32 %v512, %v502
    %v514 = vadd.f32 %v513, %v504
    %v515 = vadd.f32 %v514, %v506
    %v516 = vadd.f32 %v515, %v508
    %v517 = vadd.f32 %v516, %v510
    %v518 = vrot.slane %v517, 4
    %v519 = vadd.f32 %v517, %v518
    %v520 = vrot.slane %v519, 2
    %v521 = vadd.f32 %v519, %v520
    %v522 = vrot.slane %v521, 1
    %v523 = vadd.f32 %v521, %v522
    %v524 = vsel %vm478, %v499, 0.0
    %v525 = vsel %vm478, %v501, 0.0
    %v526 = vadd.f32 %v524, %v525
    %v527 = vsel %vm478, %v503, 0.0
    %v528 = vadd.f32 %v526, %v527
    %v529 = vsel %vm478, %v505, 0.0
    %v530 = vadd.f32 %v528, %v529
    %v531 = vsel %vm478, %v507, 0.0
    %v532 = vadd.f32 %v530, %v531
    %v533 = vsel %vm478, %v509, 0.0
    %v534 = vadd.f32 %v532, %v533
    %v535 = vsel %vm478, %v511, 0.0
    %v536 = vadd.f32 %v534, %v535
    %v537 = vrot.slane %v536, 4
    %v538 = vadd.f32 %v536, %v537
    %v539 = vrot.slane %v538, 2
    %v540 = vadd.f32 %v538, %v539
    %v541 = vrot.slane %v540, 1
    %v542 = vadd.f32 %v540, %v541
    %vm543 = vcmask 1040384
    %v544 = vsel %vm543, %v477, %v523
    %v545 = vsel %vm543, %v497, %v542
    %v546 = vld [vmem:[#allocation7] sm:$0xff]
    %v547 = vld [vmem:[#allocation7 + $0x8] sm:$0xff]
    %v548 = vld [vmem:[#allocation7 + $0x10] sm:$0xff]
    %v549 = vld [vmem:[#allocation7 + $0x18] sm:$0xff]
    %v550 = vld [vmem:[#allocation7 + $0x20] sm:$0xff]
    %v551 = vld [vmem:[#allocation7 + $0x28] sm:$0xff]
    %v552 = vld [vmem:[#allocation7 + $0x30] sm:$0xff]
    %v553 = vld [vmem:[#allocation7 + $0x38] sm:$0xff]
    %v554 = vld [vmem:[#allocation7 + $0x40] sm:$0xff]
    %v555 = vld [vmem:[#allocation7 + $0x48] sm:$0xff]
    %v556 = vld [vmem:[#allocation7 + $0x50] sm:$0xff]
    %v557 = vld [vmem:[#allocation7 + $0x58] sm:$0xff]
    %v558 = vld [vmem:[#allocation7 + $0x60] sm:$0xff]
    %v559 = vld [vmem:[#allocation7 + $0x68] sm:$0xff]
    %v560 = vld [vmem:[#allocation7 + $0x70] sm:$0xff]
    %v561 = vld [vmem:[#allocation7 + $0x78] sm:$0xff]
    %v562 = vld [vmem:[#allocation7 + $0x80] sm:$0xff]
    %v563 = vld [vmem:[#allocation7 + $0x88] sm:$0xff]
    %v564 = vld [vmem:[#allocation7 + $0x90] sm:$0xff]
    %v565 = vld [vmem:[#allocation7 + $0x98] sm:$0xff]
    %v566 = vld [vmem:[#allocation7 + $0xa0] sm:$0xff]
    %v568 = vsel %vm478, %v545, 0
    %570 = vmatpush.msra.mxu0 %v561
    %571 = vmatpush.msra.mxu0 %v560
    %572 = vmatpush.msra.mxu0 %v559
    %573 = vmatpush.msra.mxu0 %v558
    %574 = vmatpush.msra.mxu0 %v557
    %575 = vmatpush.msra.mxu0 %v556
    %576 = vmatpush.msra.mxu0 %v555
    %577 = vmatpush.msra.mxu0 %v554
    %578 = vmatpush.msra.mxu0 %v553
    %579 = vmatpush.msra.mxu0 %v552
    %580 = vmatpush.msra.mxu0 %v551
    %581 = vmatpush.msra.mxu0 %v550
    %582 = vmatpush.msra.mxu0 %v549
    %583 = vmatpush.msra.mxu0 %v548
    %584 = vmatpush.msra.mxu0 %v547
    %585 = vmatpush.msra.mxu0 %v546
    %586 = vmatmul.f32.gmra.mxu0 %v544
    %v587 = vpop.f32.mrf.mxu0
    %v588 = vadd.f32 0.0, %v587
    %589 = vdwg.mxu0
    %590 = vmatpush.msra.mxu0 0.0
    %591 = vmatpush.msra.mxu0 0.0
    %592 = vmatpush.msra.mxu0 0.0
    %593 = vmatpush.msra.mxu0 0.0
    %594 = vmatpush.msra.mxu0 0.0
    %595 = vmatpush.msra.mxu0 0.0
    %596 = vmatpush.msra.mxu0 0.0
    %597 = vmatpush.msra.mxu0 0.0
    %598 = vmatpush.msra.mxu0 0.0
    %599 = vmatpush.msra.mxu0 0.0
    %600 = vmatpush.msra.mxu0 0.0
    %601 = vmatpush.msra.mxu0 %v566
    %602 = vmatpush.msra.mxu0 %v565
    %603 = vmatpush.msra.mxu0 %v564
    %604 = vmatpush.msra.mxu0 %v563
    %605 = vmatpush.msra.mxu0 %v562
    %606 = vmatmul.f32.gmra.mxu0 %v568
    %v607 = vpop.f32.mrf.mxu0
    %v608 = vadd.f32 %v588, %v607
    %609 = vdwg.mxu0
    %v610 = vmul.f32 %v608, 0.0006377551
    %v611 = vmul.f32 %v610, %v610
    %v613 = vrot.slane %v611, 7
    %v615 = vsub.f32 %v610, %v613
    %v616 = vld [vmem:[#allocation2] sm:$0x1]
    %v617 = vadd.f32 %v615, 1e-05
    %v618 = vrsqrt.pop %v617
    %v619 = vmul.f32 %v618, %v617
    %v620 = vmul.f32 %v619, %v618
    %v621 = vmul.f32 0.5, %v620
    %v622 = vsub.f32 1.5, %v621
    %v623 = vmul.f32 %v618, %v622
    %vm624 = vweird.f32 %v617
    %vm625 = vweird.f32 %v618
    %vm626 = vmor %vm624, %vm625
    %v627 = vsel %vm626, %v618, %v623
    %v629 = vrot.slane %v627, 1
    %v631 = vmul.f32 %v616, %v629
    %v632 = vld [vmem:[#allocation2 + $0x1] sm:$0x1]
    %v633 = vmul.f32 %v631, %v610
    %v634 = vsub.f32 %v632, %v633
    %v636 = vrot.slane %v634, 7
    %v638 = vsel %vm543, %v631, %v636
    %v639 = vld [vmem:[#allocation8] sm:$0x3f]
    %vm640 = vcmask 48128
    %v642 = vsel %vm640, %v638, 0
    %vm644 = vcmask 1045504
    %v646 = vsel %vm644, %v639, 0
    %648 = vmatpush.msra.mxu0 0.0
    %649 = vmatpush.msra.mxu0 0.0
    %650 = vmatpush.msra.mxu0 0.0
    %651 = vmatpush.msra.mxu0 0.0
    %652 = vmatpush.msra.mxu0 0.0
    %653 = vmatpush.msra.mxu0 0.0
    %654 = vmatpush.msra.mxu0 0.0
    %655 = vmatpush.msra.mxu0 0.0
    %656 = vmatpush.msra.mxu0 0.0
    %657 = vmatpush.msra.mxu0 0.0
    %658 = vmatpush.msra.mxu0 0.0
    %659 = vmatpush.msra.mxu0 0.0
    %660 = vmatpush.msra.mxu0 0.0
    %661 = vmatpush.msra.mxu0 0.0
    %662 = vmatpush.msra.mxu0 0.0
    %663 = vmatpush.msra.mxu0 %v646
    %664 = vmatmul.f32.gmra.mxu0 %v642
    %v665 = vpop.f32.mrf.mxu0
    %v666 = vadd.f32 0.0, %v665
    %667 = vdwg.mxu0
    %v668 = vld [vmem:[#allocation10] sm:$0xff]
    %v669 = vld [vmem:[#allocation10 + $0x8] sm:$0xff]
    %v670 = vld [vmem:[#allocation10 + $0x10] sm:$0xff]
    %v671 = vld [vmem:[#allocation10 + $0x18] sm:$0xf]
    %v672 = vld [vmem:[%s7] sm:$0xff]
    %v673 = vld [vmem:[%s7 + $0x8] sm:$0xff]
    %v674 = vld [vmem:[%s7 + $0x10] sm:$0xff]
    %v675 = vld [vmem:[%s7 + $0x18] sm:$0xff]
    %v676 = vld [vmem:[%s7 + $0x20] sm:$0xff]
    %v677 = vld [vmem:[%s7 + $0x28] sm:$0xff]
    %v678 = vld [vmem:[%s7 + $0x30] sm:$0xff]
    %v679 = vld [vmem:[%s7 + $0x38] sm:$0xff]
    %v680 = vld [vmem:[%s7 + $0x40] sm:$0xff]
    %v681 = vld [vmem:[%s7 + $0x48] sm:$0xff]
    %v682 = vld [vmem:[%s7 + $0x50] sm:$0xff]
    %v683 = vld [vmem:[%s7 + $0x58] sm:$0xff]
    %v684 = vld [vmem:[%s7 + $0x60] sm:$0xff]
    %v685 = vld [vmem:[%s7 + $0x68] sm:$0xff]
    %v686 = vld [vmem:[%s7 + $0x70] sm:$0xff]
    %v687 = vld [vmem:[%s7 + $0x78] sm:$0xff]
    %v688 = vld [vmem:[%s7 + $0x80] sm:$0xff]
    %v689 = vld [vmem:[%s7 + $0x88] sm:$0xff]
    %v690 = vld [vmem:[%s7 + $0x90] sm:$0xff]
    %v691 = vld [vmem:[%s7 + $0x98] sm:$0xff]
    %v692 = vld [vmem:[%s7 + $0xa0] sm:$0xff]
    %v694 = vsel %vm478, %v446, 0
    %v697 = vsel %vm478, %v449, 0
    %v700 = vsel %vm478, %v452, 0
    %v703 = vsel %vm478, %v455, 0
    %v706 = vsel %vm478, %v458, 0
    %v709 = vsel %vm478, %v461, 0
    %v712 = vsel %vm478, %v464, 0
    %714 = vmatpush.msra.mxu0 %v687
    %715 = vmatpush.msra.mxu0 %v686
    %716 = vmatpush.msra.mxu0 %v685
    %717 = vmatpush.msra.mxu0 %v684
    %718 = vmatpush.msra.mxu0 %v683
    %719 = vmatpush.msra.mxu0 %v682
    %720 = vmatpush.msra.mxu0 %v681
    %721 = vmatpush.msra.mxu0 %v680
    %722 = vmatpush.msra.mxu0 %v679
    %723 = vmatpush.msra.mxu0 %v678
    %724 = vmatpush.msra.mxu0 %v677
    %725 = vmatpush.msra.mxu0 %v676
    %726 = vmatpush.msra.mxu0 %v675
    %727 = vmatpush.msra.mxu0 %v674
    %728 = vmatpush.msra.mxu0 %v673
    %729 = vmatpush.msra.mxu0 %v672
    %730 = vmatmul.f32.gmra.mxu0 %v370
    %v731 = vpop.f32.mrf.mxu0
    %v732 = vadd.f32 0.0, %v731
    %733 = vmatmul.f32.gmra.mxu0 %v373
    %v734 = vpop.f32.mrf.mxu0
    %v735 = vadd.f32 0.0, %v734
    %736 = vmatmul.f32.gmra.mxu0 %v376
    %v737 = vpop.f32.mrf.mxu0
    %v738 = vadd.f32 0.0, %v737
    %739 = vmatmul.f32.gmra.mxu0 %v379
    %v740 = vpop.f32.mrf.mxu0
    %v741 = vadd.f32 0.0, %v740
    %742 = vmatmul.f32.gmra.mxu0 %v382
    %v743 = vpop.f32.mrf.mxu0
    %v744 = vadd.f32 0.0, %v743
    %745 = vmatmul.f32.gmra.mxu0 %v385
    %v746 = vpop.f32.mrf.mxu0
    %v747 = vadd.f32 0.0, %v746
    %748 = vmatmul.f32.gmra.mxu0 %v388
    %v749 = vpop.f32.mrf.mxu0
    %v750 = vadd.f32 0.0, %v749
    %751 = vdwg.mxu0
    %752 = vmatpush.msra.mxu0 0.0
    %753 = vmatpush.msra.mxu0 0.0
    %754 = vmatpush.msra.mxu0 0.0
    %755 = vmatpush.msra.mxu0 0.0
    %756 = vmatpush.msra.mxu0 0.0
    %757 = vmatpush.msra.mxu0 0.0
    %758 = vmatpush.msra.mxu0 0.0
    %759 = vmatpush.msra.mxu0 0.0
    %760 = vmatpush.msra.mxu0 0.0
    %761 = vmatpush.msra.mxu0 0.0
    %762 = vmatpush.msra.mxu0 0.0
    %763 = vmatpush.msra.mxu0 %v692
    %764 = vmatpush.msra.mxu0 %v691
    %765 = vmatpush.msra.mxu0 %v690
    %766 = vmatpush.msra.mxu0 %v689
    %767 = vmatpush.msra.mxu0 %v688
    %768 = vmatmul.f32.gmra.mxu0 %v694
    %v769 = vpop.f32.mrf.mxu0
    %v770 = vadd.f32 %v732, %v769
    %771 = vmatmul.f32.gmra.mxu0 %v697
    %v772 = vpop.f32.mrf.mxu0
    %v773 = vadd.f32 %v735, %v772
    %774 = vmatmul.f32.gmra.mxu0 %v700
    %v775 = vpop.f32.mrf.mxu0
    %v776 = vadd.f32 %v738, %v775
    %777 = vmatmul.f32.gmra.mxu0 %v703
    %v778 = vpop.f32.mrf.mxu0
    %v779 = vadd.f32 %v741, %v778
    %780 = vmatmul.f32.gmra.mxu0 %v706
    %v781 = vpop.f32.mrf.mxu0
    %v782 = vadd.f32 %v744, %v781
    %783 = vmatmul.f32.gmra.mxu0 %v709
    %v784 = vpop.f32.mrf.mxu0
    %v785 = vadd.f32 %v747, %v784
    %786 = vmatmul.f32.gmra.mxu0 %v712
    %v787 = vpop.f32.mrf.mxu0
    %v788 = vadd.f32 %v750, %v787
    %789 = vdwg.mxu0
    %vm790 = vcmask 457728
    %v792 = vsel %vm790, %v668, 0
    %v795 = vsel %vm790, %v669, 0
    %v798 = vsel %vm790, %v670, 0
    %v801 = vsel %vm790, %v671, 0
    %803 = vmatpush.msra.mxu0 0.0
    %804 = vmatpush.msra.mxu0 0.0
    %805 = vmatpush.msra.mxu0 0.0
    %806 = vmatpush.msra.mxu0 0.0
    %807 = vmatpush.msra.mxu0 0.0
    %808 = vmatpush.msra.mxu0 0.0
    %809 = vmatpush.msra.mxu0 0.0
    %810 = vmatpush.msra.mxu0 0.0
    %811 = vmatpush.msra.mxu0 0.0
    %812 = vmatpush.msra.mxu0 %v788
    %813 = vmatpush.msra.mxu0 %v785
    %814 = vmatpush.msra.mxu0 %v782
    %815 = vmatpush.msra.mxu0 %v779
    %816 = vmatpush.msra.mxu0 %v776
    %817 = vmatpush.msra.mxu0 %v773
    %818 = vmatpush.msra.mxu0 %v770
    %819 = vmatmul.f32.gmra.mxu0 %v792
    %v820 = vpop.f32.mrf.mxu0
    %v821 = vadd.f32 0.0, %v820
    %822 = vmatmul.f32.gmra.mxu0 %v795
    %v823 = vpop.f32.mrf.mxu0
    %v824 = vadd.f32 0.0, %v823
    %825 = vmatmul.f32.gmra.mxu0 %v798
    %v826 = vpop.f32.mrf.mxu0
    %v827 = vadd.f32 0.0, %v826
    %828 = vmatmul.f32.gmra.mxu0 %v801
    %v829 = vpop.f32.mrf.mxu0
    %v830 = vadd.f32 0.0, %v829
    %831 = vdwg.mxu0
    %v832 = vperm.slane %v666, 0
    %v833 = vmul.f32 %v821, %v832
    %v834 = vmul.f32 %v824, %v832
    %v835 = vmul.f32 %v827, %v832
    %v836 = vmul.f32 %v830, %v832
    %v837 = vperm.slane %v666, 1
    %v838 = vadd.f32 %v833, %v837
    %v839 = vadd.f32 %v834, %v837
    %v840 = vadd.f32 %v835, %v837
    %v841 = vadd.f32 %v836, %v837
    %v842 = vmax.f32 %v838, 0.0
    %v843 = vmax.f32 %v839, 0.0
    %v844 = vmax.f32 %v840, 0.0
    %v845 = vmax.f32 %v841, 0.0
    %v846 = vld [vmem:[%s2] sm:$0xff]
    %v847 = vld [vmem:[%s2 + $0x8] sm:$0xff]
    %v848 = vld [vmem:[%s2 + $0x10] sm:$0xff]
    %v849 = vld [vmem:[%s2 + $0x18] sm:$0xff]
    %v850 = vld [vmem:[%s2 + $0x20] sm:$0xff]
    %v851 = vld [vmem:[%s2 + $0x28] sm:$0xff]
    %v852 = vld [vmem:[%s2 + $0x30] sm:$0xff]
    %v853 = vld [vmem:[%s2 + $0x38] sm:$0xff]
    %v854 = vld [vmem:[%s2 + $0x40] sm:$0xff]
    %v855 = vld [vmem:[%s2 + $0x48] sm:$0xff]
    %v856 = vld [vmem:[%s2 + $0x50] sm:$0xff]
    %v857 = vld [vmem:[%s2 + $0x58] sm:$0xff]
    %v858 = vld [vmem:[%s2 + $0x60] sm:$0xff]
    %v859 = vld [vmem:[%s2 + $0x68] sm:$0xff]
    %v860 = vld [vmem:[%s2 + $0x70] sm:$0xff]
    %v861 = vld [vmem:[%s2 + $0x78] sm:$0xff]
    %v862 = vld [vmem:[%s2 + $0x80] sm:$0xff]
    %v863 = vld [vmem:[%s2 + $0x88] sm:$0xff]
    %v864 = vld [vmem:[%s2 + $0x90] sm:$0xff]
    %v865 = vld [vmem:[%s2 + $0x98] sm:$0xff]
    %v866 = vld [vmem:[%s2 + $0xa0] sm:$0xf]
    %v867 = vld [vmem:[%s2 + $0xa8] sm:$0xf]
    %s868 = scalar_lea.vmem %s2, 176
    %v869 = vld [vmem:[%s868] sm:$0xff]
    %v870 = vld [vmem:[%s868 + $0x8] sm:$0xff]
    %v871 = vld [vmem:[%s868 + $0x10] sm:$0xff]
    %v872 = vld [vmem:[%s868 + $0x18] sm:$0xff]
    %v873 = vld [vmem:[%s868 + $0x20] sm:$0xff]
    %v874 = vld [vmem:[%s868 + $0x28] sm:$0xff]
    %v875 = vld [vmem:[%s868 + $0x30] sm:$0xff]
    %v876 = vld [vmem:[%s868 + $0x38] sm:$0xff]
    %v877 = vld [vmem:[%s868 + $0x40] sm:$0xff]
    %v878 = vld [vmem:[%s868 + $0x48] sm:$0xff]
    %v879 = vld [vmem:[%s868 + $0x50] sm:$0xff]
    %v880 = vld [vmem:[%s868 + $0x58] sm:$0xff]
    %v881 = vld [vmem:[%s868 + $0x60] sm:$0xff]
    %v882 = vld [vmem:[%s868 + $0x68] sm:$0xff]
    %v883 = vld [vmem:[%s868 + $0x70] sm:$0xff]
    %v884 = vld [vmem:[%s868 + $0x78] sm:$0xff]
    %v885 = vld [vmem:[%s868 + $0x80] sm:$0xff]
    %v886 = vld [vmem:[%s868 + $0x88] sm:$0xff]
    %v887 = vld [vmem:[%s868 + $0x90] sm:$0xff]
    %v888 = vld [vmem:[%s868 + $0x98] sm:$0xff]
    %v889 = vld [vmem:[%s868 + $0xa0] sm:$0xf]
    %v890 = vld [vmem:[%s868 + $0xa8] sm:$0xf]
    %v894 = vrot.slane %v842, 2
    %v895 = vrot.slane %v843, 2
    %v896 = vsel %vm644, %v894, %v895
    %v897 = vrot.slane %v844, 2
    %v898 = vsel %vm644, %v895, %v897
    %vm899 = vcmask 687104
    %v900 = vsel %vm899, %v896, 0
    %v902 = vsel %vm899, %v898, 0
    %v904 = vsel %vm899, %v897, 0
    %vm906 = vcmask 1043456
    %v908 = vsel %vm906, %v889, 0
    %v911 = vsel %vm906, %v890, 0
    %913 = vmatpush.msra.mxu0 0.0
    %914 = vmatpush.msra.mxu0 0.0
    %915 = vmatpush.msra.mxu0 0.0
    %916 = vmatpush.msra.mxu0 0.0
    %917 = vmatpush.msra.mxu0 0.0
    %918 = vmatpush.msra.mxu0 %v908
    %919 = vmatpush.msra.mxu0 %v887
    %920 = vmatpush.msra.mxu0 %v885
    %921 = vmatpush.msra.mxu0 %v883
    %922 = vmatpush.msra.mxu0 %v881
    %923 = vmatpush.msra.mxu0 %v879
    %924 = vmatpush.msra.mxu0 %v877
    %925 = vmatpush.msra.mxu0 %v875
    %926 = vmatpush.msra.mxu0 %v873
    %927 = vmatpush.msra.mxu0 %v871
    %928 = vmatpush.msra.mxu0 %v869
    %929 = vmatmul.f32.gmra.mxu0 %v900
    %v930 = vpop.f32.mrf.mxu0
    %v931 = vadd.f32 0.0, %v930
    %932 = vmatmul.f32.gmra.mxu0 %v902
    %v933 = vpop.f32.mrf.mxu0
    %v934 = vadd.f32 0.0, %v933
    %935 = vmatmul.f32.gmra.mxu0 %v904
    %v936 = vpop.f32.mrf.mxu0
    %v937 = vadd.f32 0.0, %v936
    %938 = vdwg.mxu0
    %939 = vmatpush.msra.mxu0 0.0
    %940 = vmatpush.msra.mxu0 0.0
    %941 = vmatpush.msra.mxu0 0.0
    %942 = vmatpush.msra.mxu0 0.0
    %943 = vmatpush.msra.mxu0 0.0
    %944 = vmatpush.msra.mxu0 %v911
    %945 = vmatpush.msra.mxu0 %v888
    %946 = vmatpush.msra.mxu0 %v886
    %947 = vmatpush.msra.mxu0 %v884
    %948 = vmatpush.msra.mxu0 %v882
    %949 = vmatpush.msra.mxu0 %v880
    %950 = vmatpush.msra.mxu0 %v878
    %951 = vmatpush.msra.mxu0 %v876
    %952 = vmatpush.msra.mxu0 %v874
    %953 = vmatpush.msra.mxu0 %v872
    %954 = vmatpush.msra.mxu0 %v870
    %955 = vmatmul.f32.gmra.mxu0 %v900
    %v956 = vpop.f32.mrf.mxu0
    %v957 = vadd.f32 0.0, %v956
    %958 = vmatmul.f32.gmra.mxu0 %v902
    %v959 = vpop.f32.mrf.mxu0
    %v960 = vadd.f32 0.0, %v959
    %961 = vmatmul.f32.gmra.mxu0 %v904
    %v962 = vpop.f32.mrf.mxu0
    %v963 = vadd.f32 0.0, %v962
    %964 = vdwg.mxu0
    %v965 = vsel %vm899, %v842, 0
    %v967 = vsel %vm899, %v843, 0
    %v969 = vsel %vm899, %v844, 0
    %v972 = vsel %vm906, %v866, 0
    %v975 = vsel %vm906, %v867, 0
    %977 = vmatpush.msra.mxu0 0.0
    %978 = vmatpush.msra.mxu0 0.0
    %979 = vmatpush.msra.mxu0 0.0
    %980 = vmatpush.msra.mxu0 0.0
    %981 = vmatpush.msra.mxu0 0.0
    %982 = vmatpush.msra.mxu0 %v972
    %983 = vmatpush.msra.mxu0 %v864
    %984 = vmatpush.msra.mxu0 %v862
    %985 = vmatpush.msra.mxu0 %v860
    %986 = vmatpush.msra.mxu0 %v858
    %987 = vmatpush.msra.mxu0 %v856
    %988 = vmatpush.msra.mxu0 %v854
    %989 = vmatpush.msra.mxu0 %v852
    %990 = vmatpush.msra.mxu0 %v850
    %991 = vmatpush.msra.mxu0 %v848
    %992 = vmatpush.msra.mxu0 %v846
    %993 = vmatmul.f32.gmra.mxu0 %v965
    %v994 = vpop.f32.mrf.mxu0
    %v995 = vadd.f32 %v931, %v994
    %996 = vmatmul.f32.gmra.mxu0 %v967
    %v997 = vpop.f32.mrf.mxu0
    %v998 = vadd.f32 %v934, %v997
    %999 = vmatmul.f32.gmra.mxu0 %v969
    %v1000 = vpop.f32.mrf.mxu0
    %v1001 = vadd.f32 %v937, %v1000
    %1002 = vdwg.mxu0
    %1003 = vmatpush.msra.mxu0 0.0
    %1004 = vmatpush.msra.mxu0 0.0
    %1005 = vmatpush.msra.mxu0 0.0
    %1006 = vmatpush.msra.mxu0 0.0
    %1007 = vmatpush.msra.mxu0 0.0
    %1008 = vmatpush.msra.mxu0 %v975
    %1009 = vmatpush.msra.mxu0 %v865
    %1010 = vmatpush.msra.mxu0 %v863
    %1011 = vmatpush.msra.mxu0 %v861
    %1012 = vmatpush.msra.mxu0 %v859
    %1013 = vmatpush.msra.mxu0 %v857
    %1014 = vmatpush.msra.mxu0 %v855
    %1015 = vmatpush.msra.mxu0 %v853
    %1016 = vmatpush.msra.mxu0 %v851
    %1017 = vmatpush.msra.mxu0 %v849
    %1018 = vmatpush.msra.mxu0 %v847
    %1019 = vmatmul.f32.gmra.mxu0 %v965
    %v1020 = vpop.f32.mrf.mxu0
    %v1021 = vadd.f32 %v957, %v1020
    %1022 = vmatmul.f32.gmra.mxu0 %v967
    %v1023 = vpop.f32.mrf.mxu0
    %v1024 = vadd.f32 %v960, %v1023
    %1025 = vmatmul.f32.gmra.mxu0 %v969
    %v1026 = vpop.f32.mrf.mxu0
    %v1027 = vadd.f32 %v963, %v1026
    %1028 = vdwg.mxu0
    %s1029 = scalar_lea.vmem %s2, 352
    %v1030 = vld [vmem:[%s1029] sm:$0xff]
    %v1031 = vld [vmem:[%s1029 + $0x8] sm:$0xff]
    %v1032 = vld [vmem:[%s1029 + $0x10] sm:$0xff]
    %v1033 = vld [vmem:[%s1029 + $0x18] sm:$0xff]
    %v1034 = vld [vmem:[%s1029 + $0x20] sm:$0xff]
    %v1035 = vld [vmem:[%s1029 + $0x28] sm:$0xff]
    %v1036 = vld [vmem:[%s1029 + $0x30] sm:$0xff]
    %v1037 = vld [vmem:[%s1029 + $0x38] sm:$0xff]
    %v1038 = vld [vmem:[%s1029 + $0x40] sm:$0xff]
    %v1039 = vld [vmem:[%s1029 + $0x48] sm:$0xff]
    %v1040 = vld [vmem:[%s1029 + $0x50] sm:$0xff]
    %v1041 = vld [vmem:[%s1029 + $0x58] sm:$0xff]
    %v1042 = vld [vmem:[%s1029 + $0x60] sm:$0xff]
    %v1043 = vld [vmem:[%s1029 + $0x68] sm:$0xff]
    %v1044 = vld [vmem:[%s1029 + $0x70] sm:$0xff]
    %v1045 = vld [vmem:[%s1029 + $0x78] sm:$0xff]
    %v1046 = vld [vmem:[%s1029 + $0x80] sm:$0xff]
    %v1047 = vld [vmem:[%s1029 + $0x88] sm:$0xff]
    %v1048 = vld [vmem:[%s1029 + $0x90] sm:$0xff]
    %v1049 = vld [vmem:[%s1029 + $0x98] sm:$0xff]
    %v1050 = vld [vmem:[%s1029 + $0xa0] sm:$0xf]
    %v1051 = vld [vmem:[%s1029 + $0xa8] sm:$0xf]
    %v1052 = vrot.slane %v842, 4
    %v1053 = vrot.slane %v843, 4
    %v1054 = vsel %vm906, %v1052, %v1053
    %v1055 = vrot.slane %v844, 4
    %v1056 = vsel %vm906, %v1053, %v1055
    %v1057 = vsel %vm899, %v1054, 0
    %v1059 = vsel %vm899, %v1056, 0
    %v1061 = vsel %vm899, %v1055, 0
    %v1064 = vsel %vm906, %v1050, 0
    %v1067 = vsel %vm906, %v1051, 0
    %1069 = vmatpush.msra.mxu0 0.0
    %1070 = vmatpush.msra.mxu0 0.0
    %1071 = vmatpush.msra.mxu0 0.0
    %1072 = vmatpush.msra.mxu0 0.0
    %1073 = vmatpush.msra.mxu0 0.0
    %1074 = vmatpush.msra.mxu0 %v1064
    %1075 = vmatpush.msra.mxu0 %v1048
    %1076 = vmatpush.msra.mxu0 %v1046
    %1077 = vmatpush.msra.mxu0 %v1044
    %1078 = vmatpush.msra.mxu0 %v1042
    %1079 = vmatpush.msra.mxu0 %v1040
    %1080 = vmatpush.msra.mxu0 %v1038
    %1081 = vmatpush.msra.mxu0 %v1036
    %1082 = vmatpush.msra.mxu0 %v1034
    %1083 = vmatpush.msra.mxu0 %v1032
    %1084 = vmatpush.msra.mxu0 %v1030
    %1085 = vmatmul.f32.gmra.mxu0 %v1057
    %v1086 = vpop.f32.mrf.mxu0
    %v1087 = vadd.f32 0.0, %v1086
    %1088 = vmatmul.f32.gmra.mxu0 %v1059
    %v1089 = vpop.f32.mrf.mxu0
    %v1090 = vadd.f32 0.0, %v1089
    %1091 = vmatmul.f32.gmra.mxu0 %v1061
    %v1092 = vpop.f32.mrf.mxu0
    %v1093 = vadd.f32 0.0, %v1092
    %1094 = vdwg.mxu0
    %1095 = vmatpush.msra.mxu0 0.0
    %1096 = vmatpush.msra.mxu0 0.0
    %1097 = vmatpush.msra.mxu0 0.0
    %1098 = vmatpush.msra.mxu0 0.0
    %1099 = vmatpush.msra.mxu0 0.0
    %1100 = vmatpush.msra.mxu0 %v1067
    %1101 = vmatpush.msra.mxu0 %v1049
    %1102 = vmatpush.msra.mxu0 %v1047
    %1103 = vmatpush.msra.mxu0 %v1045
    %1104 = vmatpush.msra.mxu0 %v1043
    %1105 = vmatpush.msra.mxu0 %v1041
    %1106 = vmatpush.msra.mxu0 %v1039
    %1107 = vmatpush.msra.mxu0 %v1037
    %1108 = vmatpush.msra.mxu0 %v1035
    %1109 = vmatpush.msra.mxu0 %v1033
    %1110 = vmatpush.msra.mxu0 %v1031
    %1111 = vmatmul.f32.gmra.mxu0 %v1057
    %v1112 = vpop.f32.mrf.mxu0
    %v1113 = vadd.f32 0.0, %v1112
    %1114 = vmatmul.f32.gmra.mxu0 %v1059
    %v1115 = vpop.f32.mrf.mxu0
    %v1116 = vadd.f32 0.0, %v1115
    %1117 = vmatmul.f32.gmra.mxu0 %v1061
    %v1118 = vpop.f32.mrf.mxu0
    %v1119 = vadd.f32 0.0, %v1118
    %1120 = vdwg.mxu0
    %v1121 = vadd.f32 %v995, %v1087
    %v1122 = vadd.f32 %v1021, %v1113
    %v1123 = vadd.f32 %v998, %v1090
    %v1124 = vadd.f32 %v1024, %v1116
    %v1125 = vadd.f32 %v1001, %v1093
    %v1126 = vadd.f32 %v1027, %v1119
    %s1127 = scalar_lea.vmem %s2, 528
    %v1128 = vld [vmem:[%s1127] sm:$0xff]
    %v1129 = vld [vmem:[%s1127 + $0x8] sm:$0xff]
    %v1130 = vld [vmem:[%s1127 + $0x10] sm:$0xff]
    %v1131 = vld [vmem:[%s1127 + $0x18] sm:$0xff]
    %v1132 = vld [vmem:[%s1127 + $0x20] sm:$0xff]
    %v1133 = vld [vmem:[%s1127 + $0x28] sm:$0xff]
    %v1134 = vld [vmem:[%s1127 + $0x30] sm:$0xff]
    %v1135 = vld [vmem:[%s1127 + $0x38] sm:$0xff]
    %v1136 = vld [vmem:[%s1127 + $0x40] sm:$0xff]
    %v1137 = vld [vmem:[%s1127 + $0x48] sm:$0xff]
    %v1138 = vld [vmem:[%s1127 + $0x50] sm:$0xff]
    %v1139 = vld [vmem:[%s1127 + $0x58] sm:$0xff]
    %v1140 = vld [vmem:[%s1127 + $0x60] sm:$0xff]
    %v1141 = vld [vmem:[%s1127 + $0x68] sm:$0xff]
    %v1142 = vld [vmem:[%s1127 + $0x70] sm:$0xff]
    %v1143 = vld [vmem:[%s1127 + $0x78] sm:$0xff]
    %v1144 = vld [vmem:[%s1127 + $0x80] sm:$0xff]
    %v1145 = vld [vmem:[%s1127 + $0x88] sm:$0xff]
    %v1146 = vld [vmem:[%s1127 + $0x90] sm:$0xff]
    %v1147 = vld [vmem:[%s1127 + $0x98] sm:$0xff]
    %v1148 = vld [vmem:[%s1127 + $0xa0] sm:$0xf]
    %v1149 = vld [vmem:[%s1127 + $0xa8] sm:$0xf]
    %vm1151 = vcmask 1041408
    %v1152 = vrot.slane %v842, 6
    %v1153 = vrot.slane %v843, 6
    %v1154 = vsel %vm1151, %v1152, %v1153
    %v1155 = vrot.slane %v844, 6
    %v1156 = vsel %vm1151, %v1153, %v1155
    %v1157 = vrot.slane %v845, 6
    %v1158 = vsel %vm1151, %v1155, %v1157
    %v1159 = vsel %vm899, %v1154, 0
    %v1161 = vsel %vm899, %v1156, 0
    %v1163 = vsel %vm899, %v1158, 0
    %v1166 = vsel %vm906, %v1148, 0
    %v1169 = vsel %vm906, %v1149, 0
    %1171 = vmatpush.msra.mxu0 0.0
    %1172 = vmatpush.msra.mxu0 0.0
    %1173 = vmatpush.msra.mxu0 0.0
    %1174 = vmatpush.msra.mxu0 0.0
    %1175 = vmatpush.msra.mxu0 0.0
    %1176 = vmatpush.msra.mxu0 %v1166
    %1177 = vmatpush.msra.mxu0 %v1146
    %1178 = vmatpush.msra.mxu0 %v1144
    %1179 = vmatpush.msra.mxu0 %v1142
    %1180 = vmatpush.msra.mxu0 %v1140
    %1181 = vmatpush.msra.mxu0 %v1138
    %1182 = vmatpush.msra.mxu0 %v1136
    %1183 = vmatpush.msra.mxu0 %v1134
    %1184 = vmatpush.msra.mxu0 %v1132
    %1185 = vmatpush.msra.mxu0 %v1130
    %1186 = vmatpush.msra.mxu0 %v1128
    %1187 = vmatmul.f32.gmra.mxu0 %v1159
    %v1188 = vpop.f32.mrf.mxu0
    %v1189 = vadd.f32 0.0, %v1188
    %1190 = vmatmul.f32.gmra.mxu0 %v1161
    %v1191 = vpop.f32.mrf.mxu0
    %v1192 = vadd.f32 0.0, %v1191
    %1193 = vmatmul.f32.gmra.mxu0 %v1163
    %v1194 = vpop.f32.mrf.mxu0
    %v1195 = vadd.f32 0.0, %v1194
    %1196 = vdwg.mxu0
    %1197 = vmatpush.msra.mxu0 0.0
    %1198 = vmatpush.msra.mxu0 0.0
    %1199 = vmatpush.msra.mxu0 0.0
    %1200 = vmatpush.msra.mxu0 0.0
    %1201 = vmatpush.msra.mxu0 0.0
    %1202 = vmatpush.msra.mxu0 %v1169
    %1203 = vmatpush.msra.mxu0 %v1147
    %1204 = vmatpush.msra.mxu0 %v1145
    %1205 = vmatpush.msra.mxu0 %v1143
    %1206 = vmatpush.msra.mxu0 %v1141
    %1207 = vmatpush.msra.mxu0 %v1139
    %1208 = vmatpush.msra.mxu0 %v1137
    %1209 = vmatpush.msra.mxu0 %v1135
    %1210 = vmatpush.msra.mxu0 %v1133
    %1211 = vmatpush.msra.mxu0 %v1131
    %1212 = vmatpush.msra.mxu0 %v1129
    %1213 = vmatmul.f32.gmra.mxu0 %v1159
    %v1214 = vpop.f32.mrf.mxu0
    %v1215 = vadd.f32 0.0, %v1214
    %1216 = vmatmul.f32.gmra.mxu0 %v1161
    %v1217 = vpop.f32.mrf.mxu0
    %v1218 = vadd.f32 0.0, %v1217
    %1219 = vmatmul.f32.gmra.mxu0 %v1163
    %v1220 = vpop.f32.mrf.mxu0
    %v1221 = vadd.f32 0.0, %v1220
    %1222 = vdwg.mxu0
    %v1223 = vadd.f32 %v1121, %v1189
    %v1224 = vadd.f32 %v1122, %v1215
    %v1225 = vadd.f32 %v1123, %v1192
    %v1226 = vadd.f32 %v1124, %v1218
    %v1227 = vadd.f32 %v1125, %v1195
    %v1228 = vadd.f32 %v1126, %v1221
    %s1229 = scalar_lea.vmem %s2, 704
    %v1230 = vld [vmem:[%s1229] sm:$0xff]
    %v1231 = vld [vmem:[%s1229 + $0x8] sm:$0xff]
    %v1232 = vld [vmem:[%s1229 + $0x10] sm:$0xff]
    %v1233 = vld [vmem:[%s1229 + $0x18] sm:$0xff]
    %v1234 = vld [vmem:[%s1229 + $0x20] sm:$0xff]
    %v1235 = vld [vmem:[%s1229 + $0x28] sm:$0xff]
    %v1236 = vld [vmem:[%s1229 + $0x30] sm:$0xff]
    %v1237 = vld [vmem:[%s1229 + $0x38] sm:$0xff]
    %v1238 = vld [vmem:[%s1229 + $0x40] sm:$0xff]
    %v1239 = vld [vmem:[%s1229 + $0x48] sm:$0xff]
    %v1240 = vld [vmem:[%s1229 + $0x50] sm:$0xff]
    %v1241 = vld [vmem:[%s1229 + $0x58] sm:$0xff]
    %v1242 = vld [vmem:[%s1229 + $0x60] sm:$0xff]
    %v1243 = vld [vmem:[%s1229 + $0x68] sm:$0xff]
    %v1244 = vld [vmem:[%s1229 + $0x70] sm:$0xff]
    %v1245 = vld [vmem:[%s1229 + $0x78] sm:$0xff]
    %v1246 = vld [vmem:[%s1229 + $0x80] sm:$0xff]
    %v1247 = vld [vmem:[%s1229 + $0x88] sm:$0xff]
    %v1248 = vld [vmem:[%s1229 + $0x90] sm:$0xff]
    %v1249 = vld [vmem:[%s1229 + $0x98] sm:$0xff]
    %v1250 = vld [vmem:[%s1229 + $0xa0] sm:$0xf]
    %v1251 = vld [vmem:[%s1229 + $0xa8] sm:$0xf]
    %v1252 = vsel %vm899, %v845, 0
    %v1255 = vsel %vm906, %v1250, 0
    %v1258 = vsel %vm906, %v1251, 0
    %1260 = vmatpush.msra.mxu0 0.0
    %1261 = vmatpush.msra.mxu0 0.0
    %1262 = vmatpush.msra.mxu0 0.0
    %1263 = vmatpush.msra.mxu0 0.0
    %1264 = vmatpush.msra.mxu0 0.0
    %1265 = vmatpush.msra.mxu0 %v1255
    %1266 = vmatpush.msra.mxu0 %v1248
    %1267 = vmatpush.msra.mxu0 %v1246
    %1268 = vmatpush.msra.mxu0 %v1244
    %1269 = vmatpush.msra.mxu0 %v1242
    %1270 = vmatpush.msra.mxu0 %v1240
    %1271 = vmatpush.msra.mxu0 %v1238
    %1272 = vmatpush.msra.mxu0 %v1236
    %1273 = vmatpush.msra.mxu0 %v1234
    %1274 = vmatpush.msra.mxu0 %v1232
    %1275 = vmatpush.msra.mxu0 %v1230
    %1276 = vmatmul.f32.gmra.mxu0 %v967
    %v1277 = vpop.f32.mrf.mxu0
    %v1278 = vadd.f32 0.0, %v1277
    %1279 = vmatmul.f32.gmra.mxu0 %v969
    %v1280 = vpop.f32.mrf.mxu0
    %v1281 = vadd.f32 0.0, %v1280
    %1282 = vmatmul.f32.gmra.mxu0 %v1252
    %v1283 = vpop.f32.mrf.mxu0
    %v1284 = vadd.f32 0.0, %v1283
    %1285 = vdwg.mxu0
    %1286 = vmatpush.msra.mxu0 0.0
    %1287 = vmatpush.msra.mxu0 0.0
    %1288 = vmatpush.msra.mxu0 0.0
    %1289 = vmatpush.msra.mxu0 0.0
    %1290 = vmatpush.msra.mxu0 0.0
    %1291 = vmatpush.msra.mxu0 %v1258
    %1292 = vmatpush.msra.mxu0 %v1249
    %1293 = vmatpush.msra.mxu0 %v1247
    %1294 = vmatpush.msra.mxu0 %v1245
    %1295 = vmatpush.msra.mxu0 %v1243
    %1296 = vmatpush.msra.mxu0 %v1241
    %1297 = vmatpush.msra.mxu0 %v1239
    %1298 = vmatpush.msra.mxu0 %v1237
    %1299 = vmatpush.msra.mxu0 %v1235
    %1300 = vmatpush.msra.mxu0 %v1233
    %1301 = vmatpush.msra.mxu0 %v1231
    %1302 = vmatmul.f32.gmra.mxu0 %v967
    %v1303 = vpop.f32.mrf.mxu0
    %v1304 = vadd.f32 0.0, %v1303
    %1305 = vmatmul.f32.gmra.mxu0 %v969
    %v1306 = vpop.f32.mrf.mxu0
    %v1307 = vadd.f32 0.0, %v1306
    %1308 = vmatmul.f32.gmra.mxu0 %v1252
    %v1309 = vpop.f32.mrf.mxu0
    %v1310 = vadd.f32 0.0, %v1309
    %1311 = vdwg.mxu0
    %v1312 = vadd.f32 %v1223, %v1278
    %v1313 = vadd.f32 %v1224, %v1304
    %v1314 = vadd.f32 %v1225, %v1281
    %v1315 = vadd.f32 %v1226, %v1307
    %v1316 = vadd.f32 %v1227, %v1284
    %v1317 = vadd.f32 %v1228, %v1310
    %v1318 = vadd.f32 %v1312, %v1314
    %v1319 = vsel %vm906, %v1316, 0.0
    %v1320 = vadd.f32 %v1318, %v1319
    %v1321 = vrot.slane %v1320, 4
    %v1322 = vadd.f32 %v1320, %v1321
    %v1323 = vrot.slane %v1322, 2
    %v1324 = vadd.f32 %v1322, %v1323
    %v1325 = vrot.slane %v1324, 1
    %v1326 = vadd.f32 %v1324, %v1325
    %v1327 = vsel %vm292, %v1313, 0.0
    %v1328 = vsel %vm292, %v1315, 0.0
    %v1329 = vadd.f32 %v1327, %v1328
    %vm1330 = vcmask 257024
    %v1331 = vsel %vm1330, %v1317, 0.0
    %v1332 = vadd.f32 %v1329, %v1331
    %v1333 = vrot.slane %v1332, 4
    %v1334 = vadd.f32 %v1332, %v1333
    %v1335 = vrot.slane %v1334, 2
    %v1336 = vadd.f32 %v1334, %v1335
    %v1337 = vrot.slane %v1336, 1
    %v1338 = vadd.f32 %v1336, %v1337
    %v1339 = vmul.f32 %v1312, %v1312
    %v1340 = vmul.f32 %v1313, %v1313
    %v1341 = vmul.f32 %v1314, %v1314
    %v1342 = vmul.f32 %v1315, %v1315
    %v1343 = vmul.f32 %v1316, %v1316
    %v1344 = vmul.f32 %v1317, %v1317
    %v1345 = vadd.f32 %v1339, %v1341
    %v1346 = vsel %vm906, %v1343, 0.0
    %v1347 = vadd.f32 %v1345, %v1346
    %v1348 = vrot.slane %v1347, 4
    %v1349 = vadd.f32 %v1347, %v1348
    %v1350 = vrot.slane %v1349, 2
    %v1351 = vadd.f32 %v1349, %v1350
    %v1352 = vrot.slane %v1351, 1
    %v1353 = vadd.f32 %v1351, %v1352
    %v1354 = vsel %vm292, %v1340, 0.0
    %v1355 = vsel %vm292, %v1342, 0.0
    %v1356 = vadd.f32 %v1354, %v1355
    %v1357 = vsel %vm1330, %v1344, 0.0
    %v1358 = vadd.f32 %v1356, %v1357
    %v1359 = vrot.slane %v1358, 4
    %v1360 = vadd.f32 %v1358, %v1359
    %v1361 = vrot.slane %v1360, 2
    %v1362 = vadd.f32 %v1360, %v1361
    %v1363 = vrot.slane %v1362, 1
    %v1364 = vadd.f32 %v1362, %v1363
    %v1365 = vsel %vm543, %v1326, %v1353
    %v1366 = vsel %vm543, %v1338, %v1364
    %v1367 = vld [vmem:[#allocation11] sm:$0xff]
    %v1368 = vld [vmem:[#allocation11 + $0x8] sm:$0xff]
    %v1369 = vld [vmem:[#allocation11 + $0x10] sm:$0xff]
    %v1370 = vld [vmem:[#allocation11 + $0x18] sm:$0xff]
    %v1371 = vld [vmem:[#allocation11 + $0x20] sm:$0xff]
    %v1372 = vld [vmem:[#allocation11 + $0x28] sm:$0xff]
    %v1373 = vld [vmem:[#allocation11 + $0x30] sm:$0xff]
    %v1374 = vld [vmem:[#allocation11 + $0x38] sm:$0xff]
    %v1375 = vld [vmem:[#allocation11 + $0x40] sm:$0xff]
    %v1376 = vld [vmem:[#allocation11 + $0x48] sm:$0xff]
    %v1377 = vld [vmem:[#allocation11 + $0x50] sm:$0xff]
    %v1378 = vld [vmem:[#allocation11 + $0x58] sm:$0xff]
    %v1379 = vld [vmem:[#allocation11 + $0x60] sm:$0xff]
    %v1380 = vld [vmem:[#allocation11 + $0x68] sm:$0xff]
    %v1381 = vld [vmem:[#allocation11 + $0x70] sm:$0xff]
    %v1382 = vld [vmem:[#allocation11 + $0x78] sm:$0xff]
    %v1383 = vld [vmem:[#allocation11 + $0x80] sm:$0xff]
    %v1384 = vld [vmem:[#allocation11 + $0x88] sm:$0xff]
    %v1385 = vld [vmem:[#allocation11 + $0x90] sm:$0xff]
    %v1386 = vld [vmem:[#allocation11 + $0x98] sm:$0xff]
    %v1388 = vsel %vm292, %v1366, 0
    %1390 = vmatpush.msra.mxu0 %v1382
    %1391 = vmatpush.msra.mxu0 %v1381
    %1392 = vmatpush.msra.mxu0 %v1380
    %1393 = vmatpush.msra.mxu0 %v1379
    %1394 = vmatpush.msra.mxu0 %v1378
    %1395 = vmatpush.msra.mxu0 %v1377
    %1396 = vmatpush.msra.mxu0 %v1376
    %1397 = vmatpush.msra.mxu0 %v1375
    %1398 = vmatpush.msra.mxu0 %v1374
    %1399 = vmatpush.msra.mxu0 %v1373
    %1400 = vmatpush.msra.mxu0 %v1372
    %1401 = vmatpush.msra.mxu0 %v1371
    %1402 = vmatpush.msra.mxu0 %v1370
    %1403 = vmatpush.msra.mxu0 %v1369
    %1404 = vmatpush.msra.mxu0 %v1368
    %1405 = vmatpush.msra.mxu0 %v1367
    %1406 = vmatmul.f32.gmra.mxu0 %v1365
    %v1407 = vpop.f32.mrf.mxu0
    %v1408 = vadd.f32 0.0, %v1407
    %1409 = vdwg.mxu0
    %1410 = vmatpush.msra.mxu0 0.0
    %1411 = vmatpush.msra.mxu0 0.0
    %1412 = vmatpush.msra.mxu0 0.0
    %1413 = vmatpush.msra.mxu0 0.0
    %1414 = vmatpush.msra.mxu0 0.0
    %1415 = vmatpush.msra.mxu0 0.0
    %1416 = vmatpush.msra.mxu0 0.0
    %1417 = vmatpush.msra.mxu0 0.0
    %1418 = vmatpush.msra.mxu0 0.0
    %1419 = vmatpush.msra.mxu0 0.0
    %1420 = vmatpush.msra.mxu0 0.0
    %1421 = vmatpush.msra.mxu0 0.0
    %1422 = vmatpush.msra.mxu0 %v1386
    %1423 = vmatpush.msra.mxu0 %v1385
    %1424 = vmatpush.msra.mxu0 %v1384
    %1425 = vmatpush.msra.mxu0 %v1383
    %1426 = vmatmul.f32.gmra.mxu0 %v1388
    %v1427 = vpop.f32.mrf.mxu0
    %v1428 = vadd.f32 %v1408, %v1427
    %1429 = vdwg.mxu0
    %v1430 = vmul.f32 %v1428, 0.005
    %v1431 = vmul.f32 %v1430, %v1430
    %v1433 = vrot.slane %v1431, 7
    %v1435 = vsub.f32 %v1430, %v1433
    %v1436 = vld [vmem:[#allocation5] sm:$0x1]
    %v1437 = vadd.f32 %v1435, 1e-05
    %v1438 = vrsqrt.pop %v1437
    %v1439 = vmul.f32 %v1438, %v1437
    %v1440 = vmul.f32 %v1439, %v1438
    %v1441 = vmul.f32 0.5, %v1440
    %v1442 = vsub.f32 1.5, %v1441
    %v1443 = vmul.f32 %v1438, %v1442
    %vm1444 = vweird.f32 %v1437
    %vm1445 = vweird.f32 %v1438
    %vm1446 = vmor %vm1444, %vm1445
    %v1447 = vsel %vm1446, %v1438, %v1443
    %v1449 = vrot.slane %v1447, 1
    %v1451 = vmul.f32 %v1436, %v1449
    %v1452 = vld [vmem:[#allocation5 + $0x1] sm:$0x1]
    %v1453 = vmul.f32 %v1451, %v1430
    %v1454 = vsub.f32 %v1452, %v1453
    %v1456 = vrot.slane %v1454, 7
    %v1458 = vsel %vm543, %v1451, %v1456
    %v1459 = vld [vmem:[#allocation13] sm:$0xff]
    %v1460 = vld [vmem:[#allocation13 + $0x8] sm:$0xff]
    %vm1461 = vcmask 130048
    %v1463 = vsel %vm1461, %v1458, 0
    %1465 = vmatpush.msra.mxu0 0.0
    %1466 = vmatpush.msra.mxu0 0.0
    %1467 = vmatpush.msra.mxu0 0.0
    %1468 = vmatpush.msra.mxu0 0.0
    %1469 = vmatpush.msra.mxu0 0.0
    %1470 = vmatpush.msra.mxu0 0.0
    %1471 = vmatpush.msra.mxu0 0.0
    %1472 = vmatpush.msra.mxu0 0.0
    %1473 = vmatpush.msra.mxu0 0.0
    %1474 = vmatpush.msra.mxu0 0.0
    %1475 = vmatpush.msra.mxu0 0.0
    %1476 = vmatpush.msra.mxu0 0.0
    %1477 = vmatpush.msra.mxu0 0.0
    %1478 = vmatpush.msra.mxu0 0.0
    %1479 = vmatpush.msra.mxu0 %v1460
    %1480 = vmatpush.msra.mxu0 %v1459
    %1481 = vmatmul.f32.gmra.mxu0 %v1463
    %v1482 = vpop.f32.mrf.mxu0
    %v1483 = vadd.f32 0.0, %v1482
    %1484 = vdwg.mxu0
    %v1485 = vld [vmem:[%s12] sm:$0xff]
    %v1486 = vld [vmem:[%s12 + $0x8] sm:$0x3]
    %v1487 = vld [vmem:[#allocation14] sm:$0xff]
    %v1488 = vld [vmem:[#allocation14 + $0x8] sm:$0xff]
    %v1489 = vld [vmem:[#allocation14 + $0x10] sm:$0xff]
    %v1490 = vld [vmem:[#allocation14 + $0x18] sm:$0xff]
    %v1491 = vld [vmem:[#allocation14 + $0x20] sm:$0xff]
    %v1492 = vld [vmem:[#allocation14 + $0x28] sm:$0xff]
    %v1493 = vld [vmem:[#allocation14 + $0x30] sm:$0xff]
    %v1494 = vld [vmem:[#allocation14 + $0x38] sm:$0xff]
    %v1495 = vld [vmem:[#allocation14 + $0x40] sm:$0xff]
    %v1496 = vld [vmem:[#allocation14 + $0x48] sm:$0xff]
    %v1497 = vld [vmem:[#allocation14 + $0x50] sm:$0xff]
    %v1498 = vld [vmem:[#allocation14 + $0x58] sm:$0xff]
    %v1499 = vld [vmem:[#allocation14 + $0x60] sm:$0xff]
    %v1500 = vld [vmem:[#allocation14 + $0x68] sm:$0xff]
    %v1501 = vld [vmem:[#allocation14 + $0x70] sm:$0xff]
    %v1502 = vld [vmem:[#allocation14 + $0x78] sm:$0xff]
    %v1503 = vld [vmem:[#allocation14 + $0x80] sm:$0xff]
    %v1504 = vld [vmem:[#allocation14 + $0x88] sm:$0xff]
    %v1505 = vld [vmem:[#allocation14 + $0x90] sm:$0xff]
    %v1506 = vld [vmem:[#allocation14 + $0x98] sm:$0xff]
    %v1508 = vsel %vm292, %v1313, 0
    %v1511 = vsel %vm292, %v1315, 0
    %v1514 = vsel %vm292, %v1317, 0
    %1516 = vmatpush.msra.mxu0 %v1502
    %1517 = vmatpush.msra.mxu0 %v1501
    %1518 = vmatpush.msra.mxu0 %v1500
    %1519 = vmatpush.msra.mxu0 %v1499
    %1520 = vmatpush.msra.mxu0 %v1498
    %1521 = vmatpush.msra.mxu0 %v1497
    %1522 = vmatpush.msra.mxu0 %v1496
    %1523 = vmatpush.msra.mxu0 %v1495
    %1524 = vmatpush.msra.mxu0 %v1494
    %1525 = vmatpush.msra.mxu0 %v1493
    %1526 = vmatpush.msra.mxu0 %v1492
    %1527 = vmatpush.msra.mxu0 %v1491
    %1528 = vmatpush.msra.mxu0 %v1490
    %1529 = vmatpush.msra.mxu0 %v1489
    %1530 = vmatpush.msra.mxu0 %v1488
    %1531 = vmatpush.msra.mxu0 %v1487
    %1532 = vmatmul.f32.gmra.mxu0 %v1312
    %v1533 = vpop.f32.mrf.mxu0
    %v1534 = vadd.f32 0.0, %v1533
    %1535 = vmatmul.f32.gmra.mxu0 %v1314
    %v1536 = vpop.f32.mrf.mxu0
    %v1537 = vadd.f32 0.0, %v1536
    %1538 = vmatmul.f32.gmra.mxu0 %v1316
    %v1539 = vpop.f32.mrf.mxu0
    %v1540 = vadd.f32 0.0, %v1539
    %1541 = vdwg.mxu0
    %1542 = vmatpush.msra.mxu0 0.0
    %1543 = vmatpush.msra.mxu0 0.0
    %1544 = vmatpush.msra.mxu0 0.0
    %1545 = vmatpush.msra.mxu0 0.0
    %1546 = vmatpush.msra.mxu0 0.0
    %1547 = vmatpush.msra.mxu0 0.0
    %1548 = vmatpush.msra.mxu0 0.0
    %1549 = vmatpush.msra.mxu0 0.0
    %1550 = vmatpush.msra.mxu0 0.0
    %1551 = vmatpush.msra.mxu0 0.0
    %1552 = vmatpush.msra.mxu0 0.0
    %1553 = vmatpush.msra.mxu0 0.0
    %1554 = vmatpush.msra.mxu0 %v1506
    %1555 = vmatpush.msra.mxu0 %v1505
    %1556 = vmatpush.msra.mxu0 %v1504
    %1557 = vmatpush.msra.mxu0 %v1503
    %1558 = vmatmul.f32.gmra.mxu0 %v1508
    %v1559 = vpop.f32.mrf.mxu0
    %v1560 = vadd.f32 %v1534, %v1559
    %1561 = vmatmul.f32.gmra.mxu0 %v1511
    %v1562 = vpop.f32.mrf.mxu0
    %v1563 = vadd.f32 %v1537, %v1562
    %1564 = vmatmul.f32.gmra.mxu0 %v1514
    %v1565 = vpop.f32.mrf.mxu0
    %v1566 = vadd.f32 %v1540, %v1565
    %1567 = vdwg.mxu0
    %vm1568 = vcmask 162816
    %v1570 = vsel %vm1568, %v1485, 0
    %v1573 = vsel %vm1568, %v1486, 0
    %v1576 = vsel %vm906, %v1566, 0
    %1578 = vmatpush.msra.mxu0 0.0
    %1579 = vmatpush.msra.mxu0 0.0
    %1580 = vmatpush.msra.mxu0 0.0
    %1581 = vmatpush.msra.mxu0 0.0
    %1582 = vmatpush.msra.mxu0 0.0
    %1583 = vmatpush.msra.mxu0 0.0
    %1584 = vmatpush.msra.mxu0 0.0
    %1585 = vmatpush.msra.mxu0 0.0
    %1586 = vmatpush.msra.mxu0 0.0
    %1587 = vmatpush.msra.mxu0 0.0
    %1588 = vmatpush.msra.mxu0 0.0
    %1589 = vmatpush.msra.mxu0 0.0
    %1590 = vmatpush.msra.mxu0 0.0
    %1591 = vmatpush.msra.mxu0 %v1576
    %1592 = vmatpush.msra.mxu0 %v1563
    %1593 = vmatpush.msra.mxu0 %v1560
    %1594 = vmatmul.f32.gmra.mxu0 %v1570
    %v1595 = vpop.f32.mrf.mxu0
    %v1596 = vadd.f32 0.0, %v1595
    %1597 = vmatmul.f32.gmra.mxu0 %v1573
    %v1598 = vpop.f32.mrf.mxu0
    %v1599 = vadd.f32 0.0, %v1598
    %1600 = vdwg.mxu0
    %v1601 = vperm.slane %v1483, 0
    %v1602 = vmul.f32 %v1596, %v1601
    %v1603 = vmul.f32 %v1599, %v1601
    %v1604 = vperm.slane %v1483, 1
    %v1605 = vadd.f32 %v1602, %v1604
    %v1606 = vadd.f32 %v1603, %v1604
    %v1607 = vmax.f32 %v1605, 0.0
    %v1608 = vmax.f32 %v1606, 0.0
    %v1609 = vld [vmem:[%s13] sm:$0xff]
    %v1610 = vld [vmem:[%s13 + $0x8] sm:$0xff]
    %v1611 = vld [vmem:[%s13 + $0x10] sm:$0xff]
    %v1612 = vld [vmem:[%s13 + $0x18] sm:$0xff]
    %v1613 = vld [vmem:[%s13 + $0x20] sm:$0xff]
    %v1614 = vld [vmem:[%s13 + $0x28] sm:$0xff]
    %v1615 = vld [vmem:[%s13 + $0x30] sm:$0xff]
    %v1616 = vld [vmem:[%s13 + $0x38] sm:$0xff]
    %v1617 = vld [vmem:[%s13 + $0x40] sm:$0xff]
    %v1618 = vld [vmem:[%s13 + $0x48] sm:$0xff]
    %s1619 = scalar_lea.vmem %s13, 80
    %v1620 = vld [vmem:[%s1619] sm:$0xff]
    %v1621 = vld [vmem:[%s1619 + $0x8] sm:$0xff]
    %v1622 = vld [vmem:[%s1619 + $0x10] sm:$0xff]
    %v1623 = vld [vmem:[%s1619 + $0x18] sm:$0xff]
    %v1624 = vld [vmem:[%s1619 + $0x20] sm:$0xff]
    %v1625 = vld [vmem:[%s1619 + $0x28] sm:$0xff]
    %v1626 = vld [vmem:[%s1619 + $0x30] sm:$0xff]
    %v1627 = vld [vmem:[%s1619 + $0x38] sm:$0xff]
    %v1628 = vld [vmem:[%s1619 + $0x40] sm:$0xff]
    %v1629 = vld [vmem:[%s1619 + $0x48] sm:$0xff]
    %v1631 = vrot.slane %v1607, 2
    %vm1632 = vcmask 654336
    %v1633 = vsel %vm1632, %v1631, 0
    %1635 = vmatpush.msra.mxu0 0.0
    %1636 = vmatpush.msra.mxu0 0.0
    %1637 = vmatpush.msra.mxu0 0.0
    %1638 = vmatpush.msra.mxu0 0.0
    %1639 = vmatpush.msra.mxu0 0.0
    %1640 = vmatpush.msra.mxu0 0.0
    %1641 = vmatpush.msra.mxu0 %v1629
    %1642 = vmatpush.msra.mxu0 %v1628
    %1643 = vmatpush.msra.mxu0 %v1627
    %1644 = vmatpush.msra.mxu0 %v1626
    %1645 = vmatpush.msra.mxu0 %v1625
    %1646 = vmatpush.msra.mxu0 %v1624
    %1647 = vmatpush.msra.mxu0 %v1623
    %1648 = vmatpush.msra.mxu0 %v1622
    %1649 = vmatpush.msra.mxu0 %v1621
    %1650 = vmatpush.msra.mxu0 %v1620
    %1651 = vmatmul.f32.gmra.mxu0 %v1633
    %v1652 = vpop.f32.mrf.mxu0
    %v1653 = vadd.f32 0.0, %v1652
    %1654 = vdwg.mxu0
    %v1655 = vsel %vm1632, %v1607, 0
    %1657 = vmatpush.msra.mxu0 0.0
    %1658 = vmatpush.msra.mxu0 0.0
    %1659 = vmatpush.msra.mxu0 0.0
    %1660 = vmatpush.msra.mxu0 0.0
    %1661 = vmatpush.msra.mxu0 0.0
    %1662 = vmatpush.msra.mxu0 0.0
    %1663 = vmatpush.msra.mxu0 %v1618
    %1664 = vmatpush.msra.mxu0 %v1617
    %1665 = vmatpush.msra.mxu0 %v1616
    %1666 = vmatpush.msra.mxu0 %v1615
    %1667 = vmatpush.msra.mxu0 %v1614
    %1668 = vmatpush.msra.mxu0 %v1613
    %1669 = vmatpush.msra.mxu0 %v1612
    %1670 = vmatpush.msra.mxu0 %v1611
    %1671 = vmatpush.msra.mxu0 %v1610
    %1672 = vmatpush.msra.mxu0 %v1609
    %1673 = vmatmul.f32.gmra.mxu0 %v1655
    %v1674 = vpop.f32.mrf.mxu0
    %v1675 = vadd.f32 %v1653, %v1674
    %1676 = vdwg.mxu0
    %s1677 = scalar_lea.vmem %s13, 160
    %v1678 = vld [vmem:[%s1677] sm:$0xff]
    %v1679 = vld [vmem:[%s1677 + $0x8] sm:$0xff]
    %v1680 = vld [vmem:[%s1677 + $0x10] sm:$0xff]
    %v1681 = vld [vmem:[%s1677 + $0x18] sm:$0xff]
    %v1682 = vld [vmem:[%s1677 + $0x20] sm:$0xff]
    %v1683 = vld [vmem:[%s1677 + $0x28] sm:$0xff]
    %v1684 = vld [vmem:[%s1677 + $0x30] sm:$0xff]
    %v1685 = vld [vmem:[%s1677 + $0x38] sm:$0xff]
    %v1686 = vld [vmem:[%s1677 + $0x40] sm:$0xff]
    %v1687 = vld [vmem:[%s1677 + $0x48] sm:$0xff]
    %v1688 = vrot.slane %v1607, 4
    %v1689 = vsel %vm1632, %v1688, 0
    %1691 = vmatpush.msra.mxu0 0.0
    %1692 = vmatpush.msra.mxu0 0.0
    %1693 = vmatpush.msra.mxu0 0.0
    %1694 = vmatpush.msra.mxu0 0.0
    %1695 = vmatpush.msra.mxu0 0.0
    %1696 = vmatpush.msra.mxu0 0.0
    %1697 = vmatpush.msra.mxu0 %v1687
    %1698 = vmatpush.msra.mxu0 %v1686
    %1699 = vmatpush.msra.mxu0 %v1685
    %1700 = vmatpush.msra.mxu0 %v1684
    %1701 = vmatpush.msra.mxu0 %v1683
    %1702 = vmatpush.msra.mxu0 %v1682
    %1703 = vmatpush.msra.mxu0 %v1681
    %1704 = vmatpush.msra.mxu0 %v1680
    %1705 = vmatpush.msra.mxu0 %v1679
    %1706 = vmatpush.msra.mxu0 %v1678
    %1707 = vmatmul.f32.gmra.mxu0 %v1689
    %v1708 = vpop.f32.mrf.mxu0
    %v1709 = vadd.f32 0.0, %v1708
    %1710 = vdwg.mxu0
    %v1711 = vadd.f32 %v1675, %v1709
    %s1712 = scalar_lea.vmem %s13, 240
    %v1713 = vld [vmem:[%s1712] sm:$0xff]
    %v1714 = vld [vmem:[%s1712 + $0x8] sm:$0xff]
    %v1715 = vld [vmem:[%s1712 + $0x10] sm:$0xff]
    %v1716 = vld [vmem:[%s1712 + $0x18] sm:$0xff]
    %v1717 = vld [vmem:[%s1712 + $0x20] sm:$0xff]
    %v1718 = vld [vmem:[%s1712 + $0x28] sm:$0xff]
    %v1719 = vld [vmem:[%s1712 + $0x30] sm:$0xff]
    %v1720 = vld [vmem:[%s1712 + $0x38] sm:$0xff]
    %v1721 = vld [vmem:[%s1712 + $0x40] sm:$0xff]
    %v1722 = vld [vmem:[%s1712 + $0x48] sm:$0xff]
    %v1723 = vrot.slane %v1607, 6
    %v1724 = vsel %vm1632, %v1723, 0
    %1726 = vmatpush.msra.mxu0 0.0
    %1727 = vmatpush.msra.mxu0 0.0
    %1728 = vmatpush.msra.mxu0 0.0
    %1729 = vmatpush.msra.mxu0 0.0
    %1730 = vmatpush.msra.mxu0 0.0
    %1731 = vmatpush.msra.mxu0 0.0
    %1732 = vmatpush.msra.mxu0 %v1722
    %1733 = vmatpush.msra.mxu0 %v1721
    %1734 = vmatpush.msra.mxu0 %v1720
    %1735 = vmatpush.msra.mxu0 %v1719
    %1736 = vmatpush.msra.mxu0 %v1718
    %1737 = vmatpush.msra.mxu0 %v1717
    %1738 = vmatpush.msra.mxu0 %v1716
    %1739 = vmatpush.msra.mxu0 %v1715
    %1740 = vmatpush.msra.mxu0 %v1714
    %1741 = vmatpush.msra.mxu0 %v1713
    %1742 = vmatmul.f32.gmra.mxu0 %v1724
    %v1743 = vpop.f32.mrf.mxu0
    %v1744 = vadd.f32 0.0, %v1743
    %1745 = vdwg.mxu0
    %v1746 = vadd.f32 %v1711, %v1744
    %s1747 = scalar_lea.vmem %s13, 320
    %v1748 = vld [vmem:[%s1747] sm:$0xff]
    %v1749 = vld [vmem:[%s1747 + $0x8] sm:$0xff]
    %v1750 = vld [vmem:[%s1747 + $0x10] sm:$0xff]
    %v1751 = vld [vmem:[%s1747 + $0x18] sm:$0xff]
    %v1752 = vld [vmem:[%s1747 + $0x20] sm:$0xff]
    %v1753 = vld [vmem:[%s1747 + $0x28] sm:$0xff]
    %v1754 = vld [vmem:[%s1747 + $0x30] sm:$0xff]
    %v1755 = vld [vmem:[%s1747 + $0x38] sm:$0xff]
    %v1756 = vld [vmem:[%s1747 + $0x40] sm:$0xff]
    %v1757 = vld [vmem:[%s1747 + $0x48] sm:$0xff]
    %v1759 = vsel %vm1632, %v1608, 0
    %1761 = vmatpush.msra.mxu0 0.0
    %1762 = vmatpush.msra.mxu0 0.0
    %1763 = vmatpush.msra.mxu0 0.0
    %1764 = vmatpush.msra.mxu0 0.0
    %1765 = vmatpush.msra.mxu0 0.0
    %1766 = vmatpush.msra.mxu0 0.0
    %1767 = vmatpush.msra.mxu0 %v1757
    %1768 = vmatpush.msra.mxu0 %v1756
    %1769 = vmatpush.msra.mxu0 %v1755
    %1770 = vmatpush.msra.mxu0 %v1754
    %1771 = vmatpush.msra.mxu0 %v1753
    %1772 = vmatpush.msra.mxu0 %v1752
    %1773 = vmatpush.msra.mxu0 %v1751
    %1774 = vmatpush.msra.mxu0 %v1750
    %1775 = vmatpush.msra.mxu0 %v1749
    %1776 = vmatpush.msra.mxu0 %v1748
    %1777 = vmatmul.f32.gmra.mxu0 %v1759
    %v1778 = vpop.f32.mrf.mxu0
    %v1779 = vadd.f32 0.0, %v1778
    %1780 = vdwg.mxu0
    %v1781 = vadd.f32 %v1746, %v1779
    %v1782 = vld [vmem:[#allocation16] sm:$0x1]
    %v1784 = vperm.slane %v1782, 0
    %v1786 = vadd.f32 %v1781, %v1784
    %v1787 = vld [vmem:[%s15] sm:$0xff]
    %v1788 = vld [vmem:[%s15 + $0x8] sm:$0xff]
    %v1789 = vld [vmem:[%s15 + $0x10] sm:$0xff]
    %v1790 = vld [vmem:[%s15 + $0x18] sm:$0xff]
    %v1791 = vld [vmem:[%s15 + $0x20] sm:$0xff]
    %v1792 = vld [vmem:[%s15 + $0x28] sm:$0xff]
    %v1793 = vld [vmem:[%s15 + $0x30] sm:$0xff]
    %v1794 = vld [vmem:[%s15 + $0x38] sm:$0xff]
    %v1795 = vld [vmem:[%s15 + $0x40] sm:$0xff]
    %v1796 = vld [vmem:[%s15 + $0x48] sm:$0xff]
    %v1797 = vld [vmem:[%s15 + $0x50] sm:$0xff]
    %v1798 = vld [vmem:[%s15 + $0x58] sm:$0xff]
    %v1799 = vld [vmem:[%s15 + $0x60] sm:$0xff]
    %v1800 = vld [vmem:[%s15 + $0x68] sm:$0xff]
    %v1801 = vld [vmem:[%s15 + $0x70] sm:$0xff]
    %v1802 = vld [vmem:[#allocation17] sm:$0x1]
    %v1804 = vperm.slane %v1802, 0
    %vm1806 = vcmask 982016
    %v1808 = vsel %vm1806, %v1786, 0
    %1810 = vmatpush.msra.mxu0 0.0
    %1811 = vmatpush.msra.mxu0 %v1801
    %1812 = vmatpush.msra.mxu0 %v1800
    %1813 = vmatpush.msra.mxu0 %v1799
    %1814 = vmatpush.msra.mxu0 %v1798
    %1815 = vmatpush.msra.mxu0 %v1797
    %1816 = vmatpush.msra.mxu0 %v1796
    %1817 = vmatpush.msra.mxu0 %v1795
    %1818 = vmatpush.msra.mxu0 %v1794
    %1819 = vmatpush.msra.mxu0 %v1793
    %1820 = vmatpush.msra.mxu0 %v1792
    %1821 = vmatpush.msra.mxu0 %v1791
    %1822 = vmatpush.msra.mxu0 %v1790
    %1823 = vmatpush.msra.mxu0 %v1789
    %1824 = vmatpush.msra.mxu0 %v1788
    %1825 = vmatpush.msra.mxu0 %v1787
    %1826 = vmatmul.f32.gmra.mxu0 %v1808
    %v1827 = vpop.f32.mrf.mxu0
    %v1828 = vadd.f32 %v1804, %v1827
    %1829 = vdwg.mxu0
    %v1830 = vld [vmem:[#allocation19] sm:$0xff]
    %v1831 = vld [vmem:[#allocation19 + $0x8] sm:$0xff]
    %v1832 = vld [vmem:[#allocation19 + $0x10] sm:$0xff]
    %v1833 = vld [vmem:[#allocation19 + $0x18] sm:$0xff]
    %v1834 = vld [vmem:[#allocation19 + $0x20] sm:$0xff]
    %v1835 = vld [vmem:[#allocation19 + $0x28] sm:$0xff]
    %v1836 = vld [vmem:[#allocation19 + $0x30] sm:$0xff]
    %v1837 = vld [vmem:[#allocation19 + $0x38] sm:$0xff]
    %v1838 = vld [vmem:[#allocation19 + $0x40] sm:$0xff]
    %v1839 = vld [vmem:[#allocation19 + $0x48] sm:$0xff]
    %v1840 = vld [vmem:[#allocation19 + $0x50] sm:$0xf]
    %v1841 = vld [vmem:[#allocation20] sm:$0x1]
    %v1843 = vperm.slane %v1841, 0
    %v1846 = vsel %vm899, %v1828, 0
    %v1849 = vsel %vm906, %v1840, 0
    %1851 = vmatpush.msra.mxu0 0.0
    %1852 = vmatpush.msra.mxu0 0.0
    %1853 = vmatpush.msra.mxu0 0.0
    %1854 = vmatpush.msra.mxu0 0.0
    %1855 = vmatpush.msra.mxu0 0.0
    %1856 = vmatpush.msra.mxu0 %v1849
    %1857 = vmatpush.msra.mxu0 %v1839
    %1858 = vmatpush.msra.mxu0 %v1838
    %1859 = vmatpush.msra.mxu0 %v1837
    %1860 = vmatpush.msra.mxu0 %v1836
    %1861 = vmatpush.msra.mxu0 %v1835
    %1862 = vmatpush.msra.mxu0 %v1834
    %1863 = vmatpush.msra.mxu0 %v1833
    %1864 = vmatpush.msra.mxu0 %v1832
    %1865 = vmatpush.msra.mxu0 %v1831
    %1866 = vmatpush.msra.mxu0 %v1830
    %1867 = vmatmul.f32.gmra.mxu0 %v1846
    %v1868 = vpop.f32.mrf.mxu0
    %v1869 = vadd.f32 %v1843, %v1868
    %1870 = vdwg.mxu0
    %1871 = vst [vmem:[#allocation22] sm:$0x3] %v1869
    // Predicated region
    $region126: #{forward.1} parent=1 // pred_check
      _
    $region127: #{forward.1} parent=1 // pred_check_branch
      %1873 = sbr.rel (0) target = $region129
    $region128: #{forward.1} parent=1 // pred_region
      %1875 = vsyncadd [#allocation4], 0
      %s1877 = sshll.u32 [#allocation22], 4
      %s1878 = int_to_ptr.vmem [resolvable:$true] %s1877
      %s1879 = sshll.u32 %s19, 4
      %s1880 = int_to_ptr.hbm [resolvable:$true] %s1879
      %1882 = dma.vmem_to_hbm [thread:$0]  %s1878, 32, %s1880, [#allocation4]
    $region129: #{forward.1} parent=1 // pred_fallthru
      _
    // Predicated region
    $region130: #{forward.1} parent=1 // pred_check
      _
    $region131: #{forward.1} parent=1 // pred_check_branch
      %1884 = sbr.rel (0) target = $region133
    $region132: #{forward.1} parent=1 // pred_region
      %1886 = dma.done [#allocation4], 32
    $region133: #{forward.1} parent=1 // pred_fallthru
      _
    %1887 = vsyncpa [#allocation3], 1
    %1888 = vsyncpa [#allocation6], 1
    %1889 = vsyncpa [#allocation9], 1
    %1890 = vsyncpa [#allocation12], 1
    %1891 = vsyncpa [#allocation15], 1
    %1892 = vsyncpa [#allocation18], 1
    %1893 = vsyncpa [#allocation21], 1
    %1894 = vsyncpa [#allocation4], 1

</llo_original>
